<compile_context>
chip_gen: v6e
topology: v6e:2x2x1
jax: 0.10.0
libtpu: 0.0.40
codegen_flags: <defaults>
</compile_context>

<pallas_src>
import functools

import jax
import jax.numpy as jnp
from jax import lax
from jax.experimental import pallas as pl
from jax.experimental.pallas import tpu as pltpu


def _round_up(x, m):
    return ((x + m - 1) // m) * m


def _block_kernel(x_ref, wconv_ref, sew_ref, p_ref, o_ref, *,
                  valid_c, approx_sigmoid):
    B, L, Cp = x_ref.shape
    M = B * L
    C = valid_c
    Kp = wconv_ref.shape[1]                            # round_up(3*C, 128)

    x3 = x_ref[...]                                    # (B, L, Cp) f32
    xf = x3.reshape(M, Cp)                             # flatten batch into matmul M

    # Per-sample conv-boundary masks, broadcast ONCE and reused by both convs.
    rows = lax.broadcasted_iota(jnp.int32, (M, 1), 0)
    keep_prev = jnp.broadcast_to(((rows % L) != 0).astype(jnp.float32), (M, Cp))
    keep_next = jnp.broadcast_to(((rows % L) != (L - 1)).astype(jnp.float32), (M, Cp))

    p = p_ref[...]                                     # (8, Cp) packed per-channel params
    bn1s, bn1b = p[0:1], p[1:2]
    bn2s, bn2b = p[2:3], p[3:4]
    seb1, seb2 = p[4:5], p[5:6]

    mm_dtype = wconv_ref.dtype                         # bf16 (MXU-native) or f32

    def make_xcat(x_prev, x_mid, x_next):
        # Build the (M, Kp) compact conv-input slab.  Pad lanes (>= C) of every
        # tap are exactly zero by construction, so circular lane rolls cannot
        # leak data between taps.
        if C == Cp:
            # Channels already fill whole 128-lane groups: aligned lane concat.
            return jnp.concatenate([x_prev, x_mid, x_next], axis=-1)

        def place(t, shift):
            if Kp > Cp:
                t = jnp.pad(t, ((0, 0), (0, Kp - Cp)))   # aligned zero extension
            return pltpu.roll(t, shift, axis=1) if shift else t

        # Taps land at lane offsets 0 / C / 2C, matching the compact K packing.
        return place(x_prev, 0) + place(x_mid, C) + place(x_next, 2 * C)

    def conv3(inp, w):
        # inp: (M, Cp) f32 with valid channels in lanes [0, C) and zeros beyond.
        # w:   (Kp, Cp) with taps' valid input channels packed along K.
        x_prev = pltpu.roll(inp, 1, axis=0) * keep_prev
        x_next = pltpu.roll(inp, M - 1, axis=0) * keep_next
        xcat = make_xcat(x_prev, inp, x_next)            # (M, Kp) f32
        return jnp.dot(xcat.astype(mm_dtype), w,
                       preferred_element_type=jnp.float32)

    # conv1 -> bn1 -> relu
    h = jnp.maximum(conv3(xf, wconv_ref[0]) * bn1s + bn1b, 0.0)
    # conv2 -> bn2
    h2 = conv3(h, wconv_ref[1]) * bn2s + bn2b            # (M, Cp)
    h2_3d = h2.reshape(B, L, Cp)

    # SE: per-sample global average pool over L, two 1x1 convs, sigmoid gate.
    pooled = jnp.sum(h2_3d, axis=1) * (1.0 / L)          # (B, Cp)
    z = jnp.dot(pooled.astype(mm_dtype), sew_ref[0],
                preferred_element_type=jnp.float32) + seb1
    z = jnp.maximum(z, 0.0)
    logits = jnp.dot(z.astype(mm_dtype), sew_ref[1],
                     preferred_element_type=jnp.float32) + seb2
    gate = pl.reciprocal(1.0 + jnp.exp(-logits), approx=approx_sigmoid)   # sigmoid

    # scale + residual (downsample=None -> residual is x) + relu
    out = jnp.maximum(h2_3d * gate[:, None, :] + x3, 0.0)
    o_ref[...] = out.astype(o_ref.dtype)


def pack_params(w1, w2, g1, b1, m1, v1, g2, b2, m2, v2, sw1, sb1, sw2, sb2,
                eps=1e-5, compute_dtype=jnp.float32):
    """Pack PyTorch-layout parameters into the kernel's padded/stacked operands.

    compute_dtype only affects the MXU operands (conv / SE weights and the
    in-kernel operand casts); bf16 is MXU-native on v5e/v6e/v7x and keeps f32
    accumulation, while BN / SE / residual elementwise math stays f32.
    """
    C = int(w1.shape[0])
    Cr = int(sw1.shape[0])
    assert Cr <= C, "SE reduction channels must not exceed the channel count"
    Cp = max(128, _round_up(C, 128))
    Kp = _round_up(3 * C, 128)          # compact conv K (== 3*Cp only when C % 128 == 0)

    def pack_conv(w):                                   # (Cout, Cin, 3) PyTorch layout
        wt = jnp.transpose(w, (2, 1, 0))                # (3, Cin, Cout)
        wk = wt.reshape(3 * C, C)                       # taps packed contiguously along K
        return jnp.zeros((Kp, Cp), jnp.float32).at[:3 * C, :C].set(wk)

    wconv = jnp.stack([pack_conv(w1), pack_conv(w2)]).astype(compute_dtype)

    # SE 1x1 convs as matmuls; Cr zero-padded to Cp.  Pad rows/cols/bias stay
    # exactly zero so relu(0)=0 and pad channels contribute nothing — the
    # kernel relies on this for pad-lane safety.
    sew1 = jnp.zeros((Cp, Cp), jnp.float32).at[:C, :Cr].set(sw1[:, :, 0].T)
    sew2 = jnp.zeros((Cp, Cp), jnp.float32).at[:Cr, :C].set(sw2[:, :, 0].T)
    sew = jnp.stack([sew1, sew2]).astype(compute_dtype)

    inv1 = g1 / jnp.sqrt(v1 + eps)
    inv2 = g2 / jnp.sqrt(v2 + eps)
    pvec = jnp.zeros((8, Cp), jnp.float32)              # one (8, Cp) operand for all vectors
    pvec = pvec.at[0, :C].set(inv1)
    pvec = pvec.at[1, :C].set(b1 - m1 * inv1)
    pvec = pvec.at[2, :C].set(inv2)
    pvec = pvec.at[3, :C].set(b2 - m2 * inv2)
    pvec = pvec.at[4, :Cr].set(sb1)
    pvec = pvec.at[5, :C].set(sb2)
    return wconv, sew, pvec


def to_padded_nlc(x_ncl, cp):
    """(N, C, L) -> padded channels-last (N, L, Cp)."""
    n, c, _ = x_ncl.shape
    x_nlc = jnp.transpose(x_ncl, (0, 2, 1))
    return jnp.pad(x_nlc, ((0, 0), (0, 0), (0, cp - c)))


def from_padded_nlc(x_nlcp, c):
    """Padded channels-last (N, L, Cp) -> (N, C, L)."""
    return jnp.transpose(x_nlcp[:, :, :c], (0, 2, 1))


def _choose_samples_per_step(n, l, cp, *, num_tensorcores, vmem_budget_bytes):
    # Rough per-sample live VMEM in one grid step: double-buffered x and out
    # blocks (2 arrays x 2 buffers) plus ~6 f32 (L, Cp) intermediates.
    per_sample = 10 * l * cp * 4
    b = max(1, min(n, vmem_budget_bytes // per_sample))
    if num_tensorcores > 1 and n > 1:
        # Only on multi-TC chips (v7x): keep >= num_tensorcores grid steps so
        # every TensorCore gets work.  Single-TC v5e/v6e prefer one big step.
        b = min(b, -(-n // num_tensorcores))
    return int(b)


def basic_block_3x3_padded(x_nlcp, wconv, sew, pvec, *, valid_c,
                           samples_per_step=None, num_tensorcores=1,
                           approx_sigmoid=False,
                           vmem_budget_bytes=24 * 2**20):
    """Fused block on activations already in the padded (N, L, Cp) layout.

    Chain multiple blocks through this entry point to keep activations in the
    lane-dense channels-last layout and skip per-block NCL<->NLC transpose /
    pad / slice HBM passes.
    """
    N, L, Cp = x_nlcp.shape
    assert Cp % 128 == 0 and Cp == pvec.shape[1]

    if samples_per_step is None:
        samples_per_step = _choose_samples_per_step(
            N, L, Cp, num_tensorcores=num_tensorcores,
            vmem_budget_bytes=vmem_budget_bytes)
    B = max(1, min(int(samples_per_step), N))

    # Pad the batch instead of shrinking B when N has an awkward factorization.
    Npad = _round_up(N, B)
    x_in = x_nlcp if Npad == N else jnp.pad(
        x_nlcp, ((0, Npad - N), (0, 0), (0, 0)))
    grid = (Npad // B,)

    kernel = functools.partial(_block_kernel, valid_c=valid_c,
                               approx_sigmoid=approx_sigmoid)

    # Explicit scoped-VMEM limit sized from the actual working set (keeps the
    # pipeline double-buffered on v7x's 64 MiB VMEM, harmless on v5e/v6e).
    block_bytes = B * L * Cp * 4
    weight_bytes = ((wconv.size + sew.size) * wconv.dtype.itemsize
                    + pvec.size * 4)
    est = 10 * block_bytes + 2 * weight_bytes
    vmem_limit = int(min(max(2 * est, 32 * 2**20), 48 * 2**20))

    out = pl.pallas_call(
        kernel,
        out_shape=jax.ShapeDtypeStruct((Npad, L, Cp), jnp.float32),
        grid_spec=pltpu.PrefetchScalarGridSpec(
            num_scalar_prefetch=0,
            grid=grid,
            in_specs=[
                pl.BlockSpec((B, L, Cp), lambda n: (n, 0, 0)),    # x block
                # TODO(synk): grid-invariant weights are still double-buffered
                # by the default pipeline; at very large C consider single
                # buffering them (pl.Buffered(1)) or a VMEM-scratch copy.
                pl.BlockSpec(wconv.shape, lambda n: (0, 0, 0)),   # stacked conv weights
                pl.BlockSpec(sew.shape, lambda n: (0, 0, 0)),     # stacked SE weights
                pl.BlockSpec(pvec.shape, lambda n: (0, 0)),       # packed scale/bias vectors
            ],
            out_specs=pl.BlockSpec((B, L, Cp), lambda n: (n, 0, 0)),
        ),
        compiler_params=pltpu.CompilerParams(
            dimension_semantics=("parallel",),
            vmem_limit_bytes=vmem_limit),
    )(x_in, wconv, sew, pvec)

    return out if Npad == N else out[:N]


def basic_block_3x3(x_ncl, wconv, sew, pvec, **kwargs):
    """PyTorch-layout wrapper: x (N, C, L) float32 -> (N, C, L) float32.

    For chained blocks, prefer to_padded_nlc + basic_block_3x3_padded so the
    relayout HBM passes only happen once at the model boundary.
    """
    N, C, L = x_ncl.shape
    Cp = pvec.shape[1]
    x_pad = to_padded_nlc(x_ncl, Cp)
    out = basic_block_3x3_padded(x_pad, wconv, sew, pvec, valid_c=C, **kwargs)
    return from_padded_nlc(out, C)


# ----------------------------- pure-JAX reference -----------------------------

def _conv1d_ref(x_ncl, w_oik):
    # x: (N, C, L), w: (Cout, Cin, 3), stride 1, pad 1, no bias
    return lax.conv_general_dilated(
        x_ncl, w_oik, window_strides=(1,), padding=[(1, 1)],
        dimension_numbers=("NCH", "OIH", "NCH"))


def reference_forward(x_ncl, raw):
    (w1, w2, g1, b1, m1, v1, g2, b2, m2, v2, sw1, sb1, sw2, sb2, eps) = raw
    h = _conv1d_ref(x_ncl, w1)
    h = (h - m1[None, :, None]) / jnp.sqrt(v1[None, :, None] + eps)
    h = h * g1[None, :, None] + b1[None, :, None]
    h = jnp.maximum(h, 0.0)
    h2 = _conv1d_ref(h, w2)
    h2 = (h2 - m2[None, :, None]) / jnp.sqrt(v2[None, :, None] + eps)
    h2 = h2 * g2[None, :, None] + b2[None, :, None]
    pooled = jnp.mean(h2, axis=2)                                   # (N, C)
    z = jnp.maximum(pooled @ sw1[:, :, 0].T + sb1[None, :], 0.0)    # (N, Cr)
    s = jax.nn.sigmoid(z @ sw2[:, :, 0].T + sb2[None, :])           # (N, C)
    out = h2 * s[:, :, None] + x_ncl
    return jnp.maximum(out, 0.0)


if __name__ == "__main__":
    N, C, L = 4, 32, 64          # inplanes3 = planes = 32 (> reduction 16), stride 1
    Cr = C // 16
    eps = 1e-5

    keys = jax.random.split(jax.random.PRNGKey(0), 16)
    x_ncl = jax.random.normal(keys[0], (N, C, L), jnp.float32)

    # Deterministic synthetic parameters (PyTorch layouts)
    w1 = jax.random.normal(keys[1], (C, C, 3), jnp.float32) * 0.1    # conv1 weight
    w2 = jax.random.normal(keys[2], (C, C, 3), jnp.float32) * 0.1    # conv2 weight
    g1 = 1.0 + 0.1 * jax.random.normal(keys[3], (C,), jnp.float32)
    b1 = 0.1 * jax.random.normal(keys[4], (C,), jnp.float32)
    m1 = 0.1 * jax.random.normal(keys[5], (C,), jnp.float32)
    v1 = jnp.abs(1.0 + 0.1 * jax.random.normal(keys[6], (C,), jnp.float32))
    g2 = 1.0 + 0.1 * jax.random.normal(keys[7], (C,), jnp.float32)
    b2 = 0.1 * jax.random.normal(keys[8], (C,), jnp.float32)
    m2 = 0.1 * jax.random.normal(keys[9], (C,), jnp.float32)
    v2 = jnp.abs(1.0 + 0.1 * jax.random.normal(keys[10], (C,), jnp.float32))
    sw1 = jax.random.normal(keys[11], (Cr, C, 1), jnp.float32) * 0.2  # SE fc1
    sb1 = 0.1 * jax.random.normal(keys[12], (Cr,), jnp.float32)
    sw2 = jax.random.normal(keys[13], (C, Cr, 1), jnp.float32) * 0.2  # SE fc2
    sb2 = 0.1 * jax.random.normal(keys[14], (C,), jnp.float32)

    raw = (w1, w2, g1, b1, m1, v1, g2, b2, m2, v2, sw1, sb1, sw2, sb2, eps)
    ref = jax.block_until_ready(reference_forward(x_ncl, raw))

    # f32 MXU path, exact sigmoid: strict numerical check.  With the reworked
    # heuristic the whole N=4 batch runs in a single grid step (M = 256).
    packed_f32 = pack_params(*raw[:-1], eps=eps, compute_dtype=jnp.float32)
    out_f32 = jax.block_until_ready(basic_block_3x3(x_ncl, *packed_f32))
    assert out_f32.shape == (N, C, L)
    assert jnp.allclose(out_f32, ref, atol=1e-4, rtol=1e-4), \
        float(jnp.max(jnp.abs(out_f32 - ref)))

    # bf16 MXU operands (recommended on v5e/v6e/v7x), f32 accumulation and f32
    # elementwise math; approximate-EUP sigmoid is now an explicit flag.
    packed_bf16 = pack_params(*raw[:-1], eps=eps, compute_dtype=jnp.bfloat16)
    out_bf16 = jax.block_until_ready(
        basic_block_3x3(x_ncl, *packed_bf16, approx_sigmoid=True))
    assert jnp.allclose(out_bf16, ref, atol=5e-2, rtol=5e-2), \
        float(jnp.max(jnp.abs(out_bf16 - ref)))

    # Chained blocks in the padded channels-last layout: no NCL<->NLC / pad /
    # slice HBM passes between blocks.
    Cp = packed_f32[2].shape[1]
    x_nlcp = to_padded_nlc(x_ncl, Cp)
    h1 = basic_block_3x3_padded(x_nlcp, *packed_f32, valid_c=C)
    h2 = basic_block_3x3_padded(h1, *packed_f32, valid_c=C)
    out_chain = jax.block_until_ready(from_padded_nlc(h2, C))
    ref_chain = reference_forward(reference_forward(x_ncl, raw), raw)
    assert jnp.allclose(out_chain, ref_chain, atol=1e-3, rtol=1e-3), \
        float(jnp.max(jnp.abs(out_chain - ref_chain)))

    print("KERNEL_OK")
</pallas_src>

<mosaic_0001>
module attributes {stable_mosaic.version = 11 : i64} {
  func.func @_block_kernel(%arg0: i32, %arg1: memref<4x64x128xf32, #tpu.memory_space<vmem>>, %arg2: memref<2x128x128xf32, #tpu.memory_space<vmem>>, %arg3: memref<2x128x128xf32, #tpu.memory_space<vmem>>, %arg4: memref<8x128xf32, #tpu.memory_space<vmem>>, %arg5: memref<4x64x128xf32, #tpu.memory_space<vmem>>) attributes {dimension_semantics = [#tpu.dimension_semantics<parallel>], iteration_bounds = array<i64: 1>, scalar_prefetch = 0 : i64, scratch_operands = 0 : i64, tpu.core_type = #tpu.core_type<tc>, window_params = [{transform_indices = @transform_0, window_bounds = array<i64: 4, 64, 128>}, {pipeline_mode = #tpu.pipeline_mode<synchronous>, transform_indices = @transform_1, window_bounds = array<i64: 2, 128, 128>}, {pipeline_mode = #tpu.pipeline_mode<synchronous>, transform_indices = @transform_2, window_bounds = array<i64: 2, 128, 128>}, {pipeline_mode = #tpu.pipeline_mode<synchronous>, transform_indices = @transform_3, window_bounds = array<i64: 8, 128>}, {transform_indices = @transform_4, window_bounds = array<i64: 4, 64, 128>}]} {
    %c0 = arith.constant 0 : index
    %c0_0 = arith.constant 0 : index
    %c0_1 = arith.constant 0 : index
    %0 = vector.load %arg1[%c0, %c0_0, %c0_1] : memref<4x64x128xf32, #tpu.memory_space<vmem>>, vector<4x64x128xf32>
    %1 = vector.shape_cast %0 : vector<4x64x128xf32> to vector<256x128xf32>
    %2 = tpu.iota {dimensions = array<i32: 0>} : vector<256x1xi32>
    %c64_i32 = arith.constant 64 : i32
    %c0_i32 = arith.constant 0 : i32
    %3 = arith.cmpi eq, %c64_i32, %c0_i32 : i32
    %c1_i32 = arith.constant 1 : i32
    %4 = arith.select %3, %c1_i32, %c64_i32 : i32
    %5 = vector.broadcast %4 : i32 to vector<256x1xi32>
    %6 = arith.remsi %2, %5 : vector<256x1xi32>
    %c0_i32_2 = arith.constant 0 : i32
    %7 = vector.broadcast %c0_i32_2 : i32 to vector<256x1xi32>
    %8 = arith.cmpi ne, %6, %7 : vector<256x1xi32>
    %c0_i32_3 = arith.constant 0 : i32
    %9 = vector.broadcast %c0_i32_3 : i32 to vector<256x1xi32>
    %10 = arith.cmpi slt, %6, %9 : vector<256x1xi32>
    %c0_i32_4 = arith.constant 0 : i32
    %11 = arith.cmpi slt, %4, %c0_i32_4 : i32
    %12 = vector.broadcast %11 : i1 to vector<256x1xi1>
    %13 = vector.broadcast %12 : vector<256x1xi1> to vector<256x1xi1>
    %14 = arith.xori %10, %13 : vector<256x1xi1>
    %15 = arith.andi %14, %8 : vector<256x1xi1>
    %16 = vector.broadcast %4 : i32 to vector<256x1xi32>
    %17 = arith.addi %6, %16 : vector<256x1xi32>
    %18 = arith.select %15, %17, %6 : vector<256x1xi1>, vector<256x1xi32>
    %c0_i32_5 = arith.constant 0 : i32
    %19 = vector.broadcast %c0_i32_5 : i32 to vector<256x1xi32>
    %20 = arith.cmpi ne, %18, %19 : vector<256x1xi32>
    %21 = arith.extui %20 : vector<256x1xi1> to vector<256x1xi32>
    %22 = arith.sitofp %21 : vector<256x1xi32> to vector<256x1xf32>
    %23 = vector.shape_cast %22 : vector<256x1xf32> to vector<256x1xf32>
    %24 = vector.broadcast %23 : vector<256x1xf32> to vector<256x128xf32>
    %c64_i32_6 = arith.constant 64 : i32
    %c0_i32_7 = arith.constant 0 : i32
    %25 = arith.cmpi eq, %c64_i32_6, %c0_i32_7 : i32
    %c1_i32_8 = arith.constant 1 : i32
    %26 = arith.select %25, %c1_i32_8, %c64_i32_6 : i32
    %27 = vector.broadcast %26 : i32 to vector<256x1xi32>
    %28 = arith.remsi %2, %27 : vector<256x1xi32>
    %c0_i32_9 = arith.constant 0 : i32
    %29 = vector.broadcast %c0_i32_9 : i32 to vector<256x1xi32>
    %30 = arith.cmpi ne, %28, %29 : vector<256x1xi32>
    %c0_i32_10 = arith.constant 0 : i32
    %31 = vector.broadcast %c0_i32_10 : i32 to vector<256x1xi32>
    %32 = arith.cmpi slt, %28, %31 : vector<256x1xi32>
    %c0_i32_11 = arith.constant 0 : i32
    %33 = arith.cmpi slt, %26, %c0_i32_11 : i32
    %34 = vector.broadcast %33 : i1 to vector<256x1xi1>
    %35 = vector.broadcast %34 : vector<256x1xi1> to vector<256x1xi1>
    %36 = arith.xori %32, %35 : vector<256x1xi1>
    %37 = arith.andi %36, %30 : vector<256x1xi1>
    %38 = vector.broadcast %26 : i32 to vector<256x1xi32>
    %39 = arith.addi %28, %38 : vector<256x1xi32>
    %40 = arith.select %37, %39, %28 : vector<256x1xi1>, vector<256x1xi32>
    %c63_i32 = arith.constant 63 : i32
    %41 = vector.broadcast %c63_i32 : i32 to vector<256x1xi32>
    %42 = arith.cmpi ne, %40, %41 : vector<256x1xi32>
    %43 = arith.extui %42 : vector<256x1xi1> to vector<256x1xi32>
    %44 = arith.sitofp %43 : vector<256x1xi32> to vector<256x1xf32>
    %45 = vector.shape_cast %44 : vector<256x1xf32> to vector<256x1xf32>
    %46 = vector.broadcast %45 : vector<256x1xf32> to vector<256x128xf32>
    %c0_12 = arith.constant 0 : index
    %c0_13 = arith.constant 0 : index
    %47 = vector.load %arg4[%c0_12, %c0_13] : memref<8x128xf32, #tpu.memory_space<vmem>>, vector<8x128xf32>
    %48 = vector.extract_strided_slice %47 {offsets = [0, 0], sizes = [1, 128], strides = [1, 1]} : vector<8x128xf32> to vector<1x128xf32>
    %49 = vector.extract_strided_slice %47 {offsets = [1, 0], sizes = [1, 128], strides = [1, 1]} : vector<8x128xf32> to vector<1x128xf32>
    %50 = vector.extract_strided_slice %47 {offsets = [2, 0], sizes = [1, 128], strides = [1, 1]} : vector<8x128xf32> to vector<1x128xf32>
    %51 = vector.extract_strided_slice %47 {offsets = [3, 0], sizes = [1, 128], strides = [1, 1]} : vector<8x128xf32> to vector<1x128xf32>
    %52 = vector.extract_strided_slice %47 {offsets = [4, 0], sizes = [1, 128], strides = [1, 1]} : vector<8x128xf32> to vector<1x128xf32>
    %53 = vector.extract_strided_slice %47 {offsets = [5, 0], sizes = [1, 128], strides = [1, 1]} : vector<8x128xf32> to vector<1x128xf32>
    %c0_14 = arith.constant 0 : index
    %c0_15 = arith.constant 0 : index
    %c0_16 = arith.constant 0 : index
    %54 = vector.load %arg2[%c0_14, %c0_15, %c0_16] : memref<2x128x128xf32, #tpu.memory_space<vmem>>, vector<1x128x128xf32>
    %55 = vector.shape_cast %54 : vector<1x128x128xf32> to vector<128x128xf32>
    %c1_i32_17 = arith.constant 1 : i32
    %56 = tpu.dynamic_rotate %1 by %c1_i32_17 dim 0 : vector<256x128xf32>, i32 -> vector<256x128xf32>
    %57 = arith.mulf %56, %24 : vector<256x128xf32>
    %c255_i32 = arith.constant 255 : i32
    %58 = tpu.dynamic_rotate %1 by %c255_i32 dim 0 : vector<256x128xf32>, i32 -> vector<256x128xf32>
    %59 = arith.mulf %58, %46 : vector<256x128xf32>
    %c32_i32 = arith.constant 32 : i32
    %60 = tpu.dynamic_rotate %1 by %c32_i32 dim 1 : vector<256x128xf32>, i32 -> vector<256x128xf32>
    %61 = arith.addf %57, %60 : vector<256x128xf32>
    %c64_i32_18 = arith.constant 64 : i32
    %62 = tpu.dynamic_rotate %59 by %c64_i32_18 dim 1 : vector<256x128xf32>, i32 -> vector<256x128xf32>
    %63 = arith.addf %61, %62 : vector<256x128xf32>
    %cst = arith.constant dense<0.000000e+00> : vector<256x128xf32>
    %64 = tpu.matmul %63, %55, %cst {dimension_numbers = #tpu.dot_dimension_numbers<[1], [0], [0], [1], [0, 0, 1, 1], [], []>} : vector<256x128xf32>, vector<128x128xf32>, vector<256x128xf32> -> vector<256x128xf32>
    %65 = vector.broadcast %48 : vector<1x128xf32> to vector<256x128xf32>
    %66 = arith.mulf %64, %65 : vector<256x128xf32>
    %67 = vector.broadcast %49 : vector<1x128xf32> to vector<256x128xf32>
    %68 = arith.addf %66, %67 : vector<256x128xf32>
    %cst_19 = arith.constant 0.000000e+00 : f32
    %69 = vector.broadcast %cst_19 : f32 to vector<256x128xf32>
    %70 = arith.maximumf %68, %69 : vector<256x128xf32>
    %c1 = arith.constant 1 : index
    %c0_20 = arith.constant 0 : index
    %c0_21 = arith.constant 0 : index
    %71 = vector.load %arg2[%c1, %c0_20, %c0_21] : memref<2x128x128xf32, #tpu.memory_space<vmem>>, vector<1x128x128xf32>
    %72 = vector.shape_cast %71 : vector<1x128x128xf32> to vector<128x128xf32>
    %c1_i32_22 = arith.constant 1 : i32
    %73 = tpu.dynamic_rotate %70 by %c1_i32_22 dim 0 : vector<256x128xf32>, i32 -> vector<256x128xf32>
    %74 = arith.mulf %73, %24 : vector<256x128xf32>
    %c255_i32_23 = arith.constant 255 : i32
    %75 = tpu.dynamic_rotate %70 by %c255_i32_23 dim 0 : vector<256x128xf32>, i32 -> vector<256x128xf32>
    %76 = arith.mulf %75, %46 : vector<256x128xf32>
    %c32_i32_24 = arith.constant 32 : i32
    %77 = tpu.dynamic_rotate %70 by %c32_i32_24 dim 1 : vector<256x128xf32>, i32 -> vector<256x128xf32>
    %78 = arith.addf %74, %77 : vector<256x128xf32>
    %c64_i32_25 = arith.constant 64 : i32
    %79 = tpu.dynamic_rotate %76 by %c64_i32_25 dim 1 : vector<256x128xf32>, i32 -> vector<256x128xf32>
    %80 = arith.addf %78, %79 : vector<256x128xf32>
    %cst_26 = arith.constant dense<0.000000e+00> : vector<256x128xf32>
    %81 = tpu.matmul %80, %72, %cst_26 {dimension_numbers = #tpu.dot_dimension_numbers<[1], [0], [0], [1], [0, 0, 1, 1], [], []>} : vector<256x128xf32>, vector<128x128xf32>, vector<256x128xf32> -> vector<256x128xf32>
    %82 = vector.broadcast %50 : vector<1x128xf32> to vector<256x128xf32>
    %83 = arith.mulf %81, %82 : vector<256x128xf32>
    %84 = vector.broadcast %51 : vector<1x128xf32> to vector<256x128xf32>
    %85 = arith.addf %83, %84 : vector<256x128xf32>
    %86 = vector.shape_cast %85 : vector<256x128xf32> to vector<4x64x128xf32>
    %cst_27 = arith.constant dense<0.000000e+00> : vector<4x128xf32>
    %87 = vector.multi_reduction <add>, %86, %cst_27 [1] : vector<4x64x128xf32> to vector<4x128xf32>
    %cst_28 = arith.constant 1.562500e-02 : f32
    %88 = vector.broadcast %cst_28 : f32 to vector<4x128xf32>
    %89 = arith.mulf %87, %88 : vector<4x128xf32>
    %c0_29 = arith.constant 0 : index
    %c0_30 = arith.constant 0 : index
    %c0_31 = arith.constant 0 : index
    %90 = vector.load %arg3[%c0_29, %c0_30, %c0_31] : memref<2x128x128xf32, #tpu.memory_space<vmem>>, vector<1x128x128xf32>
    %91 = vector.shape_cast %90 : vector<1x128x128xf32> to vector<128x128xf32>
    %cst_32 = arith.constant dense<0.000000e+00> : vector<4x128xf32>
    %92 = tpu.matmul %89, %91, %cst_32 {dimension_numbers = #tpu.dot_dimension_numbers<[1], [0], [0], [1], [0, 0, 1, 1], [], []>} : vector<4x128xf32>, vector<128x128xf32>, vector<4x128xf32> -> vector<4x128xf32>
    %93 = vector.broadcast %52 : vector<1x128xf32> to vector<4x128xf32>
    %94 = arith.addf %92, %93 : vector<4x128xf32>
    %cst_33 = arith.constant 0.000000e+00 : f32
    %95 = vector.broadcast %cst_33 : f32 to vector<4x128xf32>
    %96 = arith.maximumf %94, %95 : vector<4x128xf32>
    %c1_34 = arith.constant 1 : index
    %c0_35 = arith.constant 0 : index
    %c0_36 = arith.constant 0 : index
    %97 = vector.load %arg3[%c1_34, %c0_35, %c0_36] : memref<2x128x128xf32, #tpu.memory_space<vmem>>, vector<1x128x128xf32>
    %98 = vector.shape_cast %97 : vector<1x128x128xf32> to vector<128x128xf32>
    %cst_37 = arith.constant dense<0.000000e+00> : vector<4x128xf32>
    %99 = tpu.matmul %96, %98, %cst_37 {dimension_numbers = #tpu.dot_dimension_numbers<[1], [0], [0], [1], [0, 0, 1, 1], [], []>} : vector<4x128xf32>, vector<128x128xf32>, vector<4x128xf32> -> vector<4x128xf32>
    %100 = vector.broadcast %53 : vector<1x128xf32> to vector<4x128xf32>
    %101 = arith.addf %99, %100 : vector<4x128xf32>
    %cst_38 = arith.constant 0.000000e+00 : f32
    %102 = vector.broadcast %cst_38 : f32 to vector<4x128xf32>
    %103 = arith.subf %102, %101 : vector<4x128xf32>
    %104 = math.exp %103 : vector<4x128xf32>
    %cst_39 = arith.constant 1.000000e+00 : f32
    %105 = vector.broadcast %cst_39 : f32 to vector<4x128xf32>
    %106 = arith.addf %105, %104 : vector<4x128xf32>
    %107 = tpu.reciprocal %106 : vector<4x128xf32> -> vector<4x128xf32>
    %108 = vector.shape_cast %107 : vector<4x128xf32> to vector<4x1x128xf32>
    %109 = vector.broadcast %108 : vector<4x1x128xf32> to vector<4x64x128xf32>
    %110 = arith.mulf %86, %109 : vector<4x64x128xf32>
    %111 = arith.addf %110, %0 : vector<4x64x128xf32>
    %cst_40 = arith.constant 0.000000e+00 : f32
    %112 = vector.broadcast %cst_40 : f32 to vector<4x64x128xf32>
    %113 = arith.maximumf %111, %112 : vector<4x64x128xf32>
    %c0_41 = arith.constant 0 : index
    %c0_42 = arith.constant 0 : index
    %c0_43 = arith.constant 0 : index
    %114 = vector.load %arg5[%c0_41, %c0_42, %c0_43] : memref<4x64x128xf32, #tpu.memory_space<vmem>>, vector<4x64x128xf32>
    tpu.vector_store %arg5[%c0_41, %c0_42, %c0_43], %113 {strides = array<i32>} : memref<4x64x128xf32, #tpu.memory_space<vmem>>, vector<4x64x128xf32>,
    return
  }
  func.func @transform_0(%arg0: i32) -> (i32, i32, i32) {
    %c0_i32 = arith.constant 0 : i32
    %c0_i32_0 = arith.constant 0 : i32
    %c0_i32_1 = arith.constant 0 : i32
    return %arg0, %c0_i32, %c0_i32_0 : i32, i32, i32
  }
  func.func @transform_1(%arg0: i32) -> (i32, i32, i32) {
    %c0_i32 = arith.constant 0 : i32
    %c0_i32_0 = arith.constant 0 : i32
    %c0_i32_1 = arith.constant 0 : i32
    %c0_i32_2 = arith.constant 0 : i32
    return %c0_i32, %c0_i32_0, %c0_i32_1 : i32, i32, i32
  }
  func.func @transform_2(%arg0: i32) -> (i32, i32, i32) {
    %c0_i32 = arith.constant 0 : i32
    %c0_i32_0 = arith.constant 0 : i32
    %c0_i32_1 = arith.constant 0 : i32
    %c0_i32_2 = arith.constant 0 : i32
    return %c0_i32, %c0_i32_0, %c0_i32_1 : i32, i32, i32
  }
  func.func @transform_3(%arg0: i32) -> (i32, i32) {
    %c0_i32 = arith.constant 0 : i32
    %c0_i32_0 = arith.constant 0 : i32
    %c0_i32_1 = arith.constant 0 : i32
    return %c0_i32, %c0_i32_0 : i32, i32
  }
  func.func @transform_4(%arg0: i32) -> (i32, i32, i32) {
    %c0_i32 = arith.constant 0 : i32
    %c0_i32_0 = arith.constant 0 : i32
    %c0_i32_1 = arith.constant 0 : i32
    return %arg0, %c0_i32, %c0_i32_0 : i32, i32, i32
  }
}

</mosaic_0001>

<llo_original>
// kernel: tpu_custom_call.1
$region0: #{tpu_custom_call.1}
  #allocation0 [shape = 'u32[]', space=smem, size = 0x4, offset = 0x4, fixed_abs, tag = 'smem constant byte address 0x4 - core index']
  #allocation1 [shape = 'u32[144,128]{1,0:T(1,128)}', space=vmem, size = 0x12000, scoped, tag = 'internal scratch']
  %s0 = inlined_call_operand.hbm [shape: f32[4,64,128], index: 0, kind: input, shape index: {}]
  %s1 = inlined_call_operand.hbm [shape: f32[2,128,128], index: 1, kind: input, shape index: {}]
  %s2 = inlined_call_operand.hbm [shape: f32[2,128,128], index: 2, kind: input, shape index: {}]
  %s3 = inlined_call_operand.hbm [shape: f32[8,128], index: 3, kind: input, shape index: {}]
  %s4 = inlined_call_operand.hbm [shape: f32[4,64,128], index: 4, kind: output, shape index: {}]
  %s5 = sld [smem:[#allocation0]]
  $region42: #{tpu_custom_call.1} parent=0
    _
  %s7 = ssub.s32 1, %s5
  %s8 = scalar_select 0, %s7, %s5
  $region1: #{tpu_custom_call.1} parent=0
    #allocation2 [shape = 'u8[131072]{0}', space=vmem, size = 0x20000, scoped, tag = 'input window, operand 0, single buffered']
    #allocation3 [shape = 's32[1]{0}', space=sflag, size = 0x4, scoped, tag = 'scoped memory for tpu_custom_call.1']
    #allocation4 [shape = 's32[1]{0}', space=sflag, size = 0x4, scoped, tag = 'scoped memory for tpu_custom_call.1']
    #allocation5 [shape = 'u8[131072]{0}', space=vmem, size = 0x20000, scoped, tag = 'input window, operand 1, single buffered']
    #allocation6 [shape = 's32[1]{0}', space=sflag, size = 0x4, scoped, tag = 'scoped memory for tpu_custom_call.1']
    #allocation7 [shape = 'u8[131072]{0}', space=vmem, size = 0x20000, scoped, tag = 'input window, operand 2, single buffered']
    #allocation8 [shape = 'u8[4096]{0}', space=vmem, size = 0x1000, scoped, tag = 'input window, operand 3, single buffered']
    #allocation9 [shape = 's32[1]{0}', space=sflag, size = 0x4, scoped, tag = 'scoped memory for tpu_custom_call.1']
    #allocation10 [shape = 'u8[131072]{0}', space=vmem, size = 0x20000, scoped, tag = 'output window, operand 0, single buffered']
    %9 = vsyncpa [#allocation3], 0
    %10 = vsyncpa [#allocation6], 0
    %11 = vsyncpa [#allocation9], 0
    %12 = vsyncpa [#allocation4], 0
    // Predicated region
    $region2: #{tpu_custom_call.1} parent=1 // pred_check
      _
    $region3: #{tpu_custom_call.1} parent=1 // pred_check_branch
      %14 = sbr.rel (0) target = $region5
    $region4: #{tpu_custom_call.1} parent=1 // pred_region
      %s16 = ssub.s32 4096, 4096
      %17 = vsyncadd [#allocation3], %s16
      %s18 = sshll.u32 [#allocation2], 4
      %s19 = int_to_ptr.vmem [resolvable:$true] %s18
      %24 = dma.hbm_to_vmem [thread:$0]  %s0, 4096, %s19, [#allocation3], 128, 128, 8
    $region5: #{tpu_custom_call.1} parent=1 // pred_fallthru
      _
    // Predicated region
    $region6: #{tpu_custom_call.1} parent=1 // pred_check
      _
    $region7: #{tpu_custom_call.1} parent=1 // pred_check_branch
      %26 = sbr.rel (0) target = $region9
    $region8: #{tpu_custom_call.1} parent=1 // pred_region
      %s28 = ssub.s32 4096, 4096
      %29 = vsyncadd [#allocation6], %s28
      %s30 = sshll.u32 [#allocation5], 4
      %s31 = int_to_ptr.vmem [resolvable:$true] %s30
      %36 = dma.hbm_to_vmem [thread:$0]  %s1, 4096, %s31, [#allocation6], 128, 128, 8
    $region9: #{tpu_custom_call.1} parent=1 // pred_fallthru
      _
    // Predicated region
    $region10: #{tpu_custom_call.1} parent=1 // pred_check
      _
    $region11: #{tpu_custom_call.1} parent=1 // pred_check_branch
      %38 = sbr.rel (0) target = $region13
    $region12: #{tpu_custom_call.1} parent=1 // pred_region
      %s40 = ssub.s32 4096, 4096
      %41 = vsyncadd [#allocation6], %s40
      %s42 = sshll.u32 [#allocation7], 4
      %s43 = int_to_ptr.vmem [resolvable:$true] %s42
      %48 = dma.hbm_to_vmem [thread:$0]  %s2, 4096, %s43, [#allocation6], 128, 128, 8
    $region13: #{tpu_custom_call.1} parent=1 // pred_fallthru
      _
    // Predicated region
    $region14: #{tpu_custom_call.1} parent=1 // pred_check
      _
    $region15: #{tpu_custom_call.1} parent=1 // pred_check_branch
      %50 = sbr.rel (0) target = $region17
    $region16: #{tpu_custom_call.1} parent=1 // pred_region
      %s52 = ssub.s32 128, 128
      %53 = vsyncadd [#allocation9], %s52
      %s55 = sshll.u32 [#allocation8], 4
      %s56 = int_to_ptr.vmem [resolvable:$true] %s55
      %58 = dma.hbm_to_vmem [thread:$0]  %s3, 128, %s56, [#allocation9]
    $region17: #{tpu_custom_call.1} parent=1 // pred_fallthru
      _
    // Predicated region
    $region18: #{tpu_custom_call.1} parent=1 // pred_check
      _
    $region19: #{tpu_custom_call.1} parent=1 // pred_check_branch
      %60 = sbr.rel (0) target = $region21
    $region20: #{tpu_custom_call.1} parent=1 // pred_region
      %61 = dma.done [#allocation3], 4096
    $region21: #{tpu_custom_call.1} parent=1 // pred_fallthru
      _
    // Predicated region
    $region22: #{tpu_custom_call.1} parent=1 // pred_check
      _
    $region23: #{tpu_custom_call.1} parent=1 // pred_check_branch
      %63 = sbr.rel (0) target = $region25
    $region24: #{tpu_custom_call.1} parent=1 // pred_region
      %64 = dma.done [#allocation6], 4096
    $region25: #{tpu_custom_call.1} parent=1 // pred_fallthru
      _
    // Predicated region
    $region26: #{tpu_custom_call.1} parent=1 // pred_check
      _
    $region27: #{tpu_custom_call.1} parent=1 // pred_check_branch
      %66 = sbr.rel (0) target = $region29
    $region28: #{tpu_custom_call.1} parent=1 // pred_region
      %67 = dma.done [#allocation6], 4096
    $region29: #{tpu_custom_call.1} parent=1 // pred_fallthru
      _
    // Predicated region
    $region30: #{tpu_custom_call.1} parent=1 // pred_check
      _
    $region31: #{tpu_custom_call.1} parent=1 // pred_check_branch
      %69 = sbr.rel (0) target = $region33
    $region32: #{tpu_custom_call.1} parent=1 // pred_region
      %70 = dma.done [#allocation9], 128
    $region33: #{tpu_custom_call.1} parent=1 // pred_fallthru
      _
    %v71 = vld [vmem:[#allocation2] sm:$0xff]
    %v72 = vld [vmem:[#allocation2 + $0x8] sm:$0xff]
    %v73 = vld [vmem:[#allocation2 + $0x10] sm:$0xff]
    %v74 = vld [vmem:[#allocation2 + $0x18] sm:$0xff]
    %v75 = vld [vmem:[#allocation2 + $0x20] sm:$0xff]
    %v76 = vld [vmem:[#allocation2 + $0x28] sm:$0xff]
    %v77 = vld [vmem:[#allocation2 + $0x30] sm:$0xff]
    %v78 = vld [vmem:[#allocation2 + $0x38] sm:$0xff]
    %v79 = vld [vmem:[#allocation2 + $0x40] sm:$0xff]
    %v80 = vld [vmem:[#allocation2 + $0x48] sm:$0xff]
    %v81 = vld [vmem:[#allocation2 + $0x50] sm:$0xff]
    %v82 = vld [vmem:[#allocation2 + $0x58] sm:$0xff]
    %v83 = vld [vmem:[#allocation2 + $0x60] sm:$0xff]
    %v84 = vld [vmem:[#allocation2 + $0x68] sm:$0xff]
    %v85 = vld [vmem:[#allocation2 + $0x70] sm:$0xff]
    %v86 = vld [vmem:[#allocation2 + $0x78] sm:$0xff]
    %v87 = vld [vmem:[#allocation2 + $0x80] sm:$0xff]
    %v88 = vld [vmem:[#allocation2 + $0x88] sm:$0xff]
    %v89 = vld [vmem:[#allocation2 + $0x90] sm:$0xff]
    %v90 = vld [vmem:[#allocation2 + $0x98] sm:$0xff]
    %v91 = vld [vmem:[#allocation2 + $0xa0] sm:$0xff]
    %v92 = vld [vmem:[#allocation2 + $0xa8] sm:$0xff]
    %v93 = vld [vmem:[#allocation2 + $0xb0] sm:$0xff]
    %v94 = vld [vmem:[#allocation2 + $0xb8] sm:$0xff]
    %v95 = vld [vmem:[#allocation2 + $0xc0] sm:$0xff]
    %v96 = vld [vmem:[#allocation2 + $0xc8] sm:$0xff]
    %v97 = vld [vmem:[#allocation2 + $0xd0] sm:$0xff]
    %v98 = vld [vmem:[#allocation2 + $0xd8] sm:$0xff]
    %v99 = vld [vmem:[#allocation2 + $0xe0] sm:$0xff]
    %v100 = vld [vmem:[#allocation2 + $0xe8] sm:$0xff]
    %v101 = vld [vmem:[#allocation2 + $0xf0] sm:$0xff]
    %v102 = vld [vmem:[#allocation2 + $0xf8] sm:$0xff]
    %v103 = vlaneseq
    %v104 = vshrl.u32 %v103, 7
    %v105 = vadd.s32 %v104, 8
    %v106 = vadd.s32 %v104, 16
    %v107 = vadd.s32 %v104, 24
    %v108 = vadd.s32 %v104, 32
    %v109 = vadd.s32 %v104, 40
    %v110 = vadd.s32 %v104, 48
    %v111 = vadd.s32 %v104, 56
    %v112 = vadd.s32 %v104, 64
    %v113 = vadd.s32 %v104, 72
    %v114 = vadd.s32 %v104, 80
    %v115 = vadd.s32 %v104, 88
    %v116 = vadd.s32 %v104, 96
    %v117 = vadd.s32 %v104, 104
    %v118 = vadd.s32 %v104, 112
    %v119 = vadd.s32 %v104, 120
    %v120 = vadd.s32 %v104, 128
    %v121 = vadd.s32 %v104, 136
    %v122 = vadd.s32 %v104, 144
    %v123 = vadd.s32 %v104, 152
    %v124 = vadd.s32 %v104, 160
    %v125 = vadd.s32 %v104, 168
    %v126 = vadd.s32 %v104, 176
    %v127 = vadd.s32 %v104, 184
    %v128 = vadd.s32 %v104, 192
    %v129 = vadd.s32 %v104, 200
    %v130 = vadd.s32 %v104, 208
    %v131 = vadd.s32 %v104, 216
    %v132 = vadd.s32 %v104, 224
    %v133 = vadd.s32 %v104, 232
    %v134 = vadd.s32 %v104, 240
    %v135 = vadd.s32 %v104, 248
    %vm136 = vcmp.lt.s32.totalorder %v104, 0
    %v137 = vsub.s32 0, %v104
    %v138 = vsel %vm136, %v137, %v104
    %v139 = vshrl.u32 %v138, 6
    %v140 = vand.u32 %v138, 63
    %v141 = vsub.s32 0, %v140
    %v142 = vsel %vm136, %v141, %v140
    %vm143 = vcmp.lt.s32.totalorder %v105, 0
    %v144 = vsub.s32 0, %v105
    %v145 = vsel %vm143, %v144, %v105
    %v146 = vshrl.u32 %v145, 6
    %v147 = vand.u32 %v145, 63
    %v148 = vsub.s32 0, %v147
    %v149 = vsel %vm143, %v148, %v147
    %vm150 = vcmp.lt.s32.totalorder %v106, 0
    %v151 = vsub.s32 0, %v106
    %v152 = vsel %vm150, %v151, %v106
    %v153 = vshrl.u32 %v152, 6
    %v154 = vand.u32 %v152, 63
    %v155 = vsub.s32 0, %v154
    %v156 = vsel %vm150, %v155, %v154
    %vm157 = vcmp.lt.s32.totalorder %v107, 0
    %v158 = vsub.s32 0, %v107
    %v159 = vsel %vm157, %v158, %v107
    %v160 = vshrl.u32 %v159, 6
    %v161 = vand.u32 %v159, 63
    %v162 = vsub.s32 0, %v161
    %v163 = vsel %vm157, %v162, %v161
    %vm164 = vcmp.lt.s32.totalorder %v108, 0
    %v165 = vsub.s32 0, %v108
    %v166 = vsel %vm164, %v165, %v108
    %v167 = vshrl.u32 %v166, 6
    %v168 = vand.u32 %v166, 63
    %v169 = vsub.s32 0, %v168
    %v170 = vsel %vm164, %v169, %v168
    %vm171 = vcmp.lt.s32.totalorder %v109, 0
    %v172 = vsub.s32 0, %v109
    %v173 = vsel %vm171, %v172, %v109
    %v174 = vshrl.u32 %v173, 6
    %v175 = vand.u32 %v173, 63
    %v176 = vsub.s32 0, %v175
    %v177 = vsel %vm171, %v176, %v175
    %vm178 = vcmp.lt.s32.totalorder %v110, 0
    %v179 = vsub.s32 0, %v110
    %v180 = vsel %vm178, %v179, %v110
    %v181 = vshrl.u32 %v180, 6
    %v182 = vand.u32 %v180, 63
    %v183 = vsub.s32 0, %v182
    %v184 = vsel %vm178, %v183, %v182
    %vm185 = vcmp.lt.s32.totalorder %v111, 0
    %v186 = vsub.s32 0, %v111
    %v187 = vsel %vm185, %v186, %v111
    %v188 = vshrl.u32 %v187, 6
    %v189 = vand.u32 %v187, 63
    %v190 = vsub.s32 0, %v189
    %v191 = vsel %vm185, %v190, %v189
    %vm192 = vcmp.lt.s32.totalorder %v112, 0
    %v193 = vsub.s32 0, %v112
    %v194 = vsel %vm192, %v193, %v112
    %v195 = vshrl.u32 %v194, 6
    %v196 = vand.u32 %v194, 63
    %v197 = vsub.s32 0, %v196
    %v198 = vsel %vm192, %v197, %v196
    %vm199 = vcmp.lt.s32.totalorder %v113, 0
    %v200 = vsub.s32 0, %v113
    %v201 = vsel %vm199, %v200, %v113
    %v202 = vshrl.u32 %v201, 6
    %v203 = vand.u32 %v201, 63
    %v204 = vsub.s32 0, %v203
    %v205 = vsel %vm199, %v204, %v203
    %vm206 = vcmp.lt.s32.totalorder %v114, 0
    %v207 = vsub.s32 0, %v114
    %v208 = vsel %vm206, %v207, %v114
    %v209 = vshrl.u32 %v208, 6
    %v210 = vand.u32 %v208, 63
    %v211 = vsub.s32 0, %v210
    %v212 = vsel %vm206, %v211, %v210
    %vm213 = vcmp.lt.s32.totalorder %v115, 0
    %v214 = vsub.s32 0, %v115
    %v215 = vsel %vm213, %v214, %v115
    %v216 = vshrl.u32 %v215, 6
    %v217 = vand.u32 %v215, 63
    %v218 = vsub.s32 0, %v217
    %v219 = vsel %vm213, %v218, %v217
    %vm220 = vcmp.lt.s32.totalorder %v116, 0
    %v221 = vsub.s32 0, %v116
    %v222 = vsel %vm220, %v221, %v116
    %v223 = vshrl.u32 %v222, 6
    %v224 = vand.u32 %v222, 63
    %v225 = vsub.s32 0, %v224
    %v226 = vsel %vm220, %v225, %v224
    %vm227 = vcmp.lt.s32.totalorder %v117, 0
    %v228 = vsub.s32 0, %v117
    %v229 = vsel %vm227, %v228, %v117
    %v230 = vshrl.u32 %v229, 6
    %v231 = vand.u32 %v229, 63
    %v232 = vsub.s32 0, %v231
    %v233 = vsel %vm227, %v232, %v231
    %vm234 = vcmp.lt.s32.totalorder %v118, 0
    %v235 = vsub.s32 0, %v118
    %v236 = vsel %vm234, %v235, %v118
    %v237 = vshrl.u32 %v236, 6
    %v238 = vand.u32 %v236, 63
    %v239 = vsub.s32 0, %v238
    %v240 = vsel %vm234, %v239, %v238
    %vm241 = vcmp.lt.s32.totalorder %v119, 0
    %v242 = vsub.s32 0, %v119
    %v243 = vsel %vm241, %v242, %v119
    %v244 = vshrl.u32 %v243, 6
    %v245 = vand.u32 %v243, 63
    %v246 = vsub.s32 0, %v245
    %v247 = vsel %vm241, %v246, %v245
    %vm248 = vcmp.lt.s32.totalorder %v120, 0
    %v249 = vsub.s32 0, %v120
    %v250 = vsel %vm248, %v249, %v120
    %v251 = vshrl.u32 %v250, 6
    %v252 = vand.u32 %v250, 63
    %v253 = vsub.s32 0, %v252
    %v254 = vsel %vm248, %v253, %v252
    %vm255 = vcmp.lt.s32.totalorder %v121, 0
    %v256 = vsub.s32 0, %v121
    %v257 = vsel %vm255, %v256, %v121
    %v258 = vshrl.u32 %v257, 6
    %v259 = vand.u32 %v257, 63
    %v260 = vsub.s32 0, %v259
    %v261 = vsel %vm255, %v260, %v259
    %vm262 = vcmp.lt.s32.totalorder %v122, 0
    %v263 = vsub.s32 0, %v122
    %v264 = vsel %vm262, %v263, %v122
    %v265 = vshrl.u32 %v264, 6
    %v266 = vand.u32 %v264, 63
    %v267 = vsub.s32 0, %v266
    %v268 = vsel %vm262, %v267, %v266
    %vm269 = vcmp.lt.s32.totalorder %v123, 0
    %v270 = vsub.s32 0, %v123
    %v271 = vsel %vm269, %v270, %v123
    %v272 = vshrl.u32 %v271, 6
    %v273 = vand.u32 %v271, 63
    %v274 = vsub.s32 0, %v273
    %v275 = vsel %vm269, %v274, %v273
    %vm276 = vcmp.lt.s32.totalorder %v124, 0
    %v277 = vsub.s32 0, %v124
    %v278 = vsel %vm276, %v277, %v124
    %v279 = vshrl.u32 %v278, 6
    %v280 = vand.u32 %v278, 63
    %v281 = vsub.s32 0, %v280
    %v282 = vsel %vm276, %v281, %v280
    %vm283 = vcmp.lt.s32.totalorder %v125, 0
    %v284 = vsub.s32 0, %v125
    %v285 = vsel %vm283, %v284, %v125
    %v286 = vshrl.u32 %v285, 6
    %v287 = vand.u32 %v285, 63
    %v288 = vsub.s32 0, %v287
    %v289 = vsel %vm283, %v288, %v287
    %vm290 = vcmp.lt.s32.totalorder %v126, 0
    %v291 = vsub.s32 0, %v126
    %v292 = vsel %vm290, %v291, %v126
    %v293 = vshrl.u32 %v292, 6
    %v294 = vand.u32 %v292, 63
    %v295 = vsub.s32 0, %v294
    %v296 = vsel %vm290, %v295, %v294
    %vm297 = vcmp.lt.s32.totalorder %v127, 0
    %v298 = vsub.s32 0, %v127
    %v299 = vsel %vm297, %v298, %v127
    %v300 = vshrl.u32 %v299, 6
    %v301 = vand.u32 %v299, 63
    %v302 = vsub.s32 0, %v301
    %v303 = vsel %vm297, %v302, %v301
    %vm304 = vcmp.lt.s32.totalorder %v128, 0
    %v305 = vsub.s32 0, %v128
    %v306 = vsel %vm304, %v305, %v128
    %v307 = vshrl.u32 %v306, 6
    %v308 = vand.u32 %v306, 63
    %v309 = vsub.s32 0, %v308
    %v310 = vsel %vm304, %v309, %v308
    %vm311 = vcmp.lt.s32.totalorder %v129, 0
    %v312 = vsub.s32 0, %v129
    %v313 = vsel %vm311, %v312, %v129
    %v314 = vshrl.u32 %v313, 6
    %v315 = vand.u32 %v313, 63
    %v316 = vsub.s32 0, %v315
    %v317 = vsel %vm311, %v316, %v315
    %vm318 = vcmp.lt.s32.totalorder %v130, 0
    %v319 = vsub.s32 0, %v130
    %v320 = vsel %vm318, %v319, %v130
    %v321 = vshrl.u32 %v320, 6
    %v322 = vand.u32 %v320, 63
    %v323 = vsub.s32 0, %v322
    %v324 = vsel %vm318, %v323, %v322
    %vm325 = vcmp.lt.s32.totalorder %v131, 0
    %v326 = vsub.s32 0, %v131
    %v327 = vsel %vm325, %v326, %v131
    %v328 = vshrl.u32 %v327, 6
    %v329 = vand.u32 %v327, 63
    %v330 = vsub.s32 0, %v329
    %v331 = vsel %vm325, %v330, %v329
    %vm332 = vcmp.lt.s32.totalorder %v132, 0
    %v333 = vsub.s32 0, %v132
    %v334 = vsel %vm332, %v333, %v132
    %v335 = vshrl.u32 %v334, 6
    %v336 = vand.u32 %v334, 63
    %v337 = vsub.s32 0, %v336
    %v338 = vsel %vm332, %v337, %v336
    %vm339 = vcmp.lt.s32.totalorder %v133, 0
    %v340 = vsub.s32 0, %v133
    %v341 = vsel %vm339, %v340, %v133
    %v342 = vshrl.u32 %v341, 6
    %v343 = vand.u32 %v341, 63
    %v344 = vsub.s32 0, %v343
    %v345 = vsel %vm339, %v344, %v343
    %vm346 = vcmp.lt.s32.totalorder %v134, 0
    %v347 = vsub.s32 0, %v134
    %v348 = vsel %vm346, %v347, %v134
    %v349 = vshrl.u32 %v348, 6
    %v350 = vand.u32 %v348, 63
    %v351 = vsub.s32 0, %v350
    %v352 = vsel %vm346, %v351, %v350
    %vm353 = vcmp.lt.s32.totalorder %v135, 0
    %v354 = vsub.s32 0, %v135
    %v355 = vsel %vm353, %v354, %v135
    %v356 = vshrl.u32 %v355, 6
    %v357 = vand.u32 %v355, 63
    %v358 = vsub.s32 0, %v357
    %v359 = vsel %vm353, %v358, %v357
    %vm360 = vcmp.ne.s32.totalorder %v142, 0
    %vm361 = vcmp.ne.s32.totalorder %v149, 0
    %vm362 = vcmp.ne.s32.totalorder %v156, 0
    %vm363 = vcmp.ne.s32.totalorder %v163, 0
    %vm364 = vcmp.ne.s32.totalorder %v170, 0
    %vm365 = vcmp.ne.s32.totalorder %v177, 0
    %vm366 = vcmp.ne.s32.totalorder %v184, 0
    %vm367 = vcmp.ne.s32.totalorder %v191, 0
    %vm368 = vcmp.ne.s32.totalorder %v198, 0
    %vm369 = vcmp.ne.s32.totalorder %v205, 0
    %vm370 = vcmp.ne.s32.totalorder %v212, 0
    %vm371 = vcmp.ne.s32.totalorder %v219, 0
    %vm372 = vcmp.ne.s32.totalorder %v226, 0
    %vm373 = vcmp.ne.s32.totalorder %v233, 0
    %vm374 = vcmp.ne.s32.totalorder %v240, 0
    %vm375 = vcmp.ne.s32.totalorder %v247, 0
    %vm376 = vcmp.ne.s32.totalorder %v254, 0
    %vm377 = vcmp.ne.s32.totalorder %v261, 0
    %vm378 = vcmp.ne.s32.totalorder %v268, 0
    %vm379 = vcmp.ne.s32.totalorder %v275, 0
    %vm380 = vcmp.ne.s32.totalorder %v282, 0
    %vm381 = vcmp.ne.s32.totalorder %v289, 0
    %vm382 = vcmp.ne.s32.totalorder %v296, 0
    %vm383 = vcmp.ne.s32.totalorder %v303, 0
    %vm384 = vcmp.ne.s32.totalorder %v310, 0
    %vm385 = vcmp.ne.s32.totalorder %v317, 0
    %vm386 = vcmp.ne.s32.totalorder %v324, 0
    %vm387 = vcmp.ne.s32.totalorder %v331, 0
    %vm388 = vcmp.ne.s32.totalorder %v338, 0
    %vm389 = vcmp.ne.s32.totalorder %v345, 0
    %vm390 = vcmp.ne.s32.totalorder %v352, 0
    %vm391 = vcmp.ne.s32.totalorder %v359, 0
    %vm392 = vcmp.lt.s32.totalorder %v142, 0
    %vm393 = vcmp.lt.s32.totalorder %v149, 0
    %vm394 = vcmp.lt.s32.totalorder %v156, 0
    %vm395 = vcmp.lt.s32.totalorder %v163, 0
    %vm396 = vcmp.lt.s32.totalorder %v170, 0
    %vm397 = vcmp.lt.s32.totalorder %v177, 0
    %vm398 = vcmp.lt.s32.totalorder %v184, 0
    %vm399 = vcmp.lt.s32.totalorder %v191, 0
    %vm400 = vcmp.lt.s32.totalorder %v198, 0
    %vm401 = vcmp.lt.s32.totalorder %v205, 0
    %vm402 = vcmp.lt.s32.totalorder %v212, 0
    %vm403 = vcmp.lt.s32.totalorder %v219, 0
    %vm404 = vcmp.lt.s32.totalorder %v226, 0
    %vm405 = vcmp.lt.s32.totalorder %v233, 0
    %vm406 = vcmp.lt.s32.totalorder %v240, 0
    %vm407 = vcmp.lt.s32.totalorder %v247, 0
    %vm408 = vcmp.lt.s32.totalorder %v254, 0
    %vm409 = vcmp.lt.s32.totalorder %v261, 0
    %vm410 = vcmp.lt.s32.totalorder %v268, 0
    %vm411 = vcmp.lt.s32.totalorder %v275, 0
    %vm412 = vcmp.lt.s32.totalorder %v282, 0
    %vm413 = vcmp.lt.s32.totalorder %v289, 0
    %vm414 = vcmp.lt.s32.totalorder %v296, 0
    %vm415 = vcmp.lt.s32.totalorder %v303, 0
    %vm416 = vcmp.lt.s32.totalorder %v310, 0
    %vm417 = vcmp.lt.s32.totalorder %v317, 0
    %vm418 = vcmp.lt.s32.totalorder %v324, 0
    %vm419 = vcmp.lt.s32.totalorder %v331, 0
    %vm420 = vcmp.lt.s32.totalorder %v338, 0
    %vm421 = vcmp.lt.s32.totalorder %v345, 0
    %vm422 = vcmp.lt.s32.totalorder %v352, 0
    %vm423 = vcmp.lt.s32.totalorder %v359, 0
    %vm424 = vmand %vm392, %vm360
    %vm425 = vmand %vm393, %vm361
    %vm426 = vmand %vm394, %vm362
    %vm427 = vmand %vm395, %vm363
    %vm428 = vmand %vm396, %vm364
    %vm429 = vmand %vm397, %vm365
    %vm430 = vmand %vm398, %vm366
    %vm431 = vmand %vm399, %vm367
    %vm432 = vmand %vm400, %vm368
    %vm433 = vmand %vm401, %vm369
    %vm434 = vmand %vm402, %vm370
    %vm435 = vmand %vm403, %vm371
    %vm436 = vmand %vm404, %vm372
    %vm437 = vmand %vm405, %vm373
    %vm438 = vmand %vm406, %vm374
    %vm439 = vmand %vm407, %vm375
    %vm440 = vmand %vm408, %vm376
    %vm441 = vmand %vm409, %vm377
    %vm442 = vmand %vm410, %vm378
    %vm443 = vmand %vm411, %vm379
    %vm444 = vmand %vm412, %vm380
    %vm445 = vmand %vm413, %vm381
    %vm446 = vmand %vm414, %vm382
    %vm447 = vmand %vm415, %vm383
    %vm448 = vmand %vm416, %vm384
    %vm449 = vmand %vm417, %vm385
    %vm450 = vmand %vm418, %vm386
    %vm451 = vmand %vm419, %vm387
    %vm452 = vmand %vm420, %vm388
    %vm453 = vmand %vm421, %vm389
    %vm454 = vmand %vm422, %vm390
    %vm455 = vmand %vm423, %vm391
    %v456 = vadd.s32 %v142, 64
    %v457 = vadd.s32 %v149, 64
    %v458 = vadd.s32 %v156, 64
    %v459 = vadd.s32 %v163, 64
    %v460 = vadd.s32 %v170, 64
    %v461 = vadd.s32 %v177, 64
    %v462 = vadd.s32 %v184, 64
    %v463 = vadd.s32 %v191, 64
    %v464 = vadd.s32 %v198, 64
    %v465 = vadd.s32 %v205, 64
    %v466 = vadd.s32 %v212, 64
    %v467 = vadd.s32 %v219, 64
    %v468 = vadd.s32 %v226, 64
    %v469 = vadd.s32 %v233, 64
    %v470 = vadd.s32 %v240, 64
    %v471 = vadd.s32 %v247, 64
    %v472 = vadd.s32 %v254, 64
    %v473 = vadd.s32 %v261, 64
    %v474 = vadd.s32 %v268, 64
    %v475 = vadd.s32 %v275, 64
    %v476 = vadd.s32 %v282, 64
    %v477 = vadd.s32 %v289, 64
    %v478 = vadd.s32 %v296, 64
    %v479 = vadd.s32 %v303, 64
    %v480 = vadd.s32 %v310, 64
    %v481 = vadd.s32 %v317, 64
    %v482 = vadd.s32 %v324, 64
    %v483 = vadd.s32 %v331, 64
    %v484 = vadd.s32 %v338, 64
    %v485 = vadd.s32 %v345, 64
    %v486 = vadd.s32 %v352, 64
    %v487 = vadd.s32 %v359, 64
    %v488 = vsel %vm424, %v456, %v142
    %v489 = vsel %vm425, %v457, %v149
    %v490 = vsel %vm426, %v458, %v156
    %v491 = vsel %vm427, %v459, %v163
    %v492 = vsel %vm428, %v460, %v170
    %v493 = vsel %vm429, %v461, %v177
    %v494 = vsel %vm430, %v462, %v184
    %v495 = vsel %vm431, %v463, %v191
    %v496 = vsel %vm432, %v464, %v198
    %v497 = vsel %vm433, %v465, %v205
    %v498 = vsel %vm434, %v466, %v212
    %v499 = vsel %vm435, %v467, %v219
    %v500 = vsel %vm436, %v468, %v226
    %v501 = vsel %vm437, %v469, %v233
    %v502 = vsel %vm438, %v470, %v240
    %v503 = vsel %vm439, %v471, %v247
    %v504 = vsel %vm440, %v472, %v254
    %v505 = vsel %vm441, %v473, %v261
    %v506 = vsel %vm442, %v474, %v268
    %v507 = vsel %vm443, %v475, %v275
    %v508 = vsel %vm444, %v476, %v282
    %v509 = vsel %vm445, %v477, %v289
    %v510 = vsel %vm446, %v478, %v296
    %v511 = vsel %vm447, %v479, %v303
    %v512 = vsel %vm448, %v480, %v310
    %v513 = vsel %vm449, %v481, %v317
    %v514 = vsel %vm450, %v482, %v324
    %v515 = vsel %vm451, %v483, %v331
    %v516 = vsel %vm452, %v484, %v338
    %v517 = vsel %vm453, %v485, %v345
    %v518 = vsel %vm454, %v486, %v352
    %v519 = vsel %vm455, %v487, %v359
    %vm520 = vcmp.ne.s32.totalorder %v488, 0
    %vm521 = vcmp.ne.s32.totalorder %v489, 0
    %vm522 = vcmp.ne.s32.totalorder %v490, 0
    %vm523 = vcmp.ne.s32.totalorder %v491, 0
    %vm524 = vcmp.ne.s32.totalorder %v492, 0
    %vm525 = vcmp.ne.s32.totalorder %v493, 0
    %vm526 = vcmp.ne.s32.totalorder %v494, 0
    %vm527 = vcmp.ne.s32.totalorder %v495, 0
    %vm528 = vcmp.ne.s32.totalorder %v496, 0
    %vm529 = vcmp.ne.s32.totalorder %v497, 0
    %vm530 = vcmp.ne.s32.totalorder %v498, 0
    %vm531 = vcmp.ne.s32.totalorder %v499, 0
    %vm532 = vcmp.ne.s32.totalorder %v500, 0
    %vm533 = vcmp.ne.s32.totalorder %v501, 0
    %vm534 = vcmp.ne.s32.totalorder %v502, 0
    %vm535 = vcmp.ne.s32.totalorder %v503, 0
    %vm536 = vcmp.ne.s32.totalorder %v504, 0
    %vm537 = vcmp.ne.s32.totalorder %v505, 0
    %vm538 = vcmp.ne.s32.totalorder %v506, 0
    %vm539 = vcmp.ne.s32.totalorder %v507, 0
    %vm540 = vcmp.ne.s32.totalorder %v508, 0
    %vm541 = vcmp.ne.s32.totalorder %v509, 0
    %vm542 = vcmp.ne.s32.totalorder %v510, 0
    %vm543 = vcmp.ne.s32.totalorder %v511, 0
    %vm544 = vcmp.ne.s32.totalorder %v512, 0
    %vm545 = vcmp.ne.s32.totalorder %v513, 0
    %vm546 = vcmp.ne.s32.totalorder %v514, 0
    %vm547 = vcmp.ne.s32.totalorder %v515, 0
    %vm548 = vcmp.ne.s32.totalorder %v516, 0
    %vm549 = vcmp.ne.s32.totalorder %v517, 0
    %vm550 = vcmp.ne.s32.totalorder %v518, 0
    %vm551 = vcmp.ne.s32.totalorder %v519, 0
    %v552 = vsel %vm520, 1, 0
    %v553 = vsel %vm521, 1, 0
    %v554 = vsel %vm522, 1, 0
    %v555 = vsel %vm523, 1, 0
    %v556 = vsel %vm524, 1, 0
    %v557 = vsel %vm525, 1, 0
    %v558 = vsel %vm526, 1, 0
    %v559 = vsel %vm527, 1, 0
    %v560 = vsel %vm528, 1, 0
    %v561 = vsel %vm529, 1, 0
    %v562 = vsel %vm530, 1, 0
    %v563 = vsel %vm531, 1, 0
    %v564 = vsel %vm532, 1, 0
    %v565 = vsel %vm533, 1, 0
    %v566 = vsel %vm534, 1, 0
    %v567 = vsel %vm535, 1, 0
    %v568 = vsel %vm536, 1, 0
    %v569 = vsel %vm537, 1, 0
    %v570 = vsel %vm538, 1, 0
    %v571 = vsel %vm539, 1, 0
    %v572 = vsel %vm540, 1, 0
    %v573 = vsel %vm541, 1, 0
    %v574 = vsel %vm542, 1, 0
    %v575 = vsel %vm543, 1, 0
    %v576 = vsel %vm544, 1, 0
    %v577 = vsel %vm545, 1, 0
    %v578 = vsel %vm546, 1, 0
    %v579 = vsel %vm547, 1, 0
    %v580 = vsel %vm548, 1, 0
    %v581 = vsel %vm549, 1, 0
    %v582 = vsel %vm550, 1, 0
    %v583 = vsel %vm551, 1, 0
    %v584 = vcvt.s32.f32 %v552
    %v585 = vcvt.s32.f32 %v553
    %v586 = vcvt.s32.f32 %v554
    %v587 = vcvt.s32.f32 %v555
    %v588 = vcvt.s32.f32 %v556
    %v589 = vcvt.s32.f32 %v557
    %v590 = vcvt.s32.f32 %v558
    %v591 = vcvt.s32.f32 %v559
    %v592 = vcvt.s32.f32 %v560
    %v593 = vcvt.s32.f32 %v561
    %v594 = vcvt.s32.f32 %v562
    %v595 = vcvt.s32.f32 %v563
    %v596 = vcvt.s32.f32 %v564
    %v597 = vcvt.s32.f32 %v565
    %v598 = vcvt.s32.f32 %v566
    %v599 = vcvt.s32.f32 %v567
    %v600 = vcvt.s32.f32 %v568
    %v601 = vcvt.s32.f32 %v569
    %v602 = vcvt.s32.f32 %v570
    %v603 = vcvt.s32.f32 %v571
    %v604 = vcvt.s32.f32 %v572
    %v605 = vcvt.s32.f32 %v573
    %v606 = vcvt.s32.f32 %v574
    %v607 = vcvt.s32.f32 %v575
    %v608 = vcvt.s32.f32 %v576
    %v609 = vcvt.s32.f32 %v577
    %v610 = vcvt.s32.f32 %v578
    %v611 = vcvt.s32.f32 %v579
    %v612 = vcvt.s32.f32 %v580
    %v613 = vcvt.s32.f32 %v581
    %v614 = vcvt.s32.f32 %v582
    %v615 = vcvt.s32.f32 %v583
    %vm616 = vcmp.ne.s32.totalorder %v488, 63
    %vm617 = vcmp.ne.s32.totalorder %v489, 63
    %vm618 = vcmp.ne.s32.totalorder %v490, 63
    %vm619 = vcmp.ne.s32.totalorder %v491, 63
    %vm620 = vcmp.ne.s32.totalorder %v492, 63
    %vm621 = vcmp.ne.s32.totalorder %v493, 63
    %vm622 = vcmp.ne.s32.totalorder %v494, 63
    %vm623 = vcmp.ne.s32.totalorder %v495, 63
    %vm624 = vcmp.ne.s32.totalorder %v496, 63
    %vm625 = vcmp.ne.s32.totalorder %v497, 63
    %vm626 = vcmp.ne.s32.totalorder %v498, 63
    %vm627 = vcmp.ne.s32.totalorder %v499, 63
    %vm628 = vcmp.ne.s32.totalorder %v500, 63
    %vm629 = vcmp.ne.s32.totalorder %v501, 63
    %vm630 = vcmp.ne.s32.totalorder %v502, 63
    %vm631 = vcmp.ne.s32.totalorder %v503, 63
    %vm632 = vcmp.ne.s32.totalorder %v504, 63
    %vm633 = vcmp.ne.s32.totalorder %v505, 63
    %vm634 = vcmp.ne.s32.totalorder %v506, 63
    %vm635 = vcmp.ne.s32.totalorder %v507, 63
    %vm636 = vcmp.ne.s32.totalorder %v508, 63
    %vm637 = vcmp.ne.s32.totalorder %v509, 63
    %vm638 = vcmp.ne.s32.totalorder %v510, 63
    %vm639 = vcmp.ne.s32.totalorder %v511, 63
    %vm640 = vcmp.ne.s32.totalorder %v512, 63
    %vm641 = vcmp.ne.s32.totalorder %v513, 63
    %vm642 = vcmp.ne.s32.totalorder %v514, 63
    %vm643 = vcmp.ne.s32.totalorder %v515, 63
    %vm644 = vcmp.ne.s32.totalorder %v516, 63
    %vm645 = vcmp.ne.s32.totalorder %v517, 63
    %vm646 = vcmp.ne.s32.totalorder %v518, 63
    %vm647 = vcmp.ne.s32.totalorder %v519, 63
    %v648 = vsel %vm616, 1, 0
    %v649 = vsel %vm617, 1, 0
    %v650 = vsel %vm618, 1, 0
    %v651 = vsel %vm619, 1, 0
    %v652 = vsel %vm620, 1, 0
    %v653 = vsel %vm621, 1, 0
    %v654 = vsel %vm622, 1, 0
    %v655 = vsel %vm623, 1, 0
    %v656 = vsel %vm624, 1, 0
    %v657 = vsel %vm625, 1, 0
    %v658 = vsel %vm626, 1, 0
    %v659 = vsel %vm627, 1, 0
    %v660 = vsel %vm628, 1, 0
    %v661 = vsel %vm629, 1, 0
    %v662 = vsel %vm630, 1, 0
    %v663 = vsel %vm631, 1, 0
    %v664 = vsel %vm632, 1, 0
    %v665 = vsel %vm633, 1, 0
    %v666 = vsel %vm634, 1, 0
    %v667 = vsel %vm635, 1, 0
    %v668 = vsel %vm636, 1, 0
    %v669 = vsel %vm637, 1, 0
    %v670 = vsel %vm638, 1, 0
    %v671 = vsel %vm639, 1, 0
    %v672 = vsel %vm640, 1, 0
    %v673 = vsel %vm641, 1, 0
    %v674 = vsel %vm642, 1, 0
    %v675 = vsel %vm643, 1, 0
    %v676 = vsel %vm644, 1, 0
    %v677 = vsel %vm645, 1, 0
    %v678 = vsel %vm646, 1, 0
    %v679 = vsel %vm647, 1, 0
    %v680 = vcvt.s32.f32 %v648
    %v681 = vcvt.s32.f32 %v649
    %v682 = vcvt.s32.f32 %v650
    %v683 = vcvt.s32.f32 %v651
    %v684 = vcvt.s32.f32 %v652
    %v685 = vcvt.s32.f32 %v653
    %v686 = vcvt.s32.f32 %v654
    %v687 = vcvt.s32.f32 %v655
    %v688 = vcvt.s32.f32 %v656
    %v689 = vcvt.s32.f32 %v657
    %v690 = vcvt.s32.f32 %v658
    %v691 = vcvt.s32.f32 %v659
    %v692 = vcvt.s32.f32 %v660
    %v693 = vcvt.s32.f32 %v661
    %v694 = vcvt.s32.f32 %v662
    %v695 = vcvt.s32.f32 %v663
    %v696 = vcvt.s32.f32 %v664
    %v697 = vcvt.s32.f32 %v665
    %v698 = vcvt.s32.f32 %v666
    %v699 = vcvt.s32.f32 %v667
    %v700 = vcvt.s32.f32 %v668
    %v701 = vcvt.s32.f32 %v669
    %v702 = vcvt.s32.f32 %v670
    %v703 = vcvt.s32.f32 %v671
    %v704 = vcvt.s32.f32 %v672
    %v705 = vcvt.s32.f32 %v673
    %v706 = vcvt.s32.f32 %v674
    %v707 = vcvt.s32.f32 %v675
    %v708 = vcvt.s32.f32 %v676
    %v709 = vcvt.s32.f32 %v677
    %v710 = vcvt.s32.f32 %v678
    %v711 = vcvt.s32.f32 %v679
    %v712 = vld [vmem:[#allocation8] sm:$0xff]
    %v713 = vld [vmem:[#allocation5] sm:$0xff]
    %v714 = vld [vmem:[#allocation5 + $0x8] sm:$0xff]
    %v715 = vld [vmem:[#allocation5 + $0x10] sm:$0xff]
    %v716 = vld [vmem:[#allocation5 + $0x18] sm:$0xff]
    %v717 = vld [vmem:[#allocation5 + $0x20] sm:$0xff]
    %v718 = vld [vmem:[#allocation5 + $0x28] sm:$0xff]
    %v719 = vld [vmem:[#allocation5 + $0x30] sm:$0xff]
    %v720 = vld [vmem:[#allocation5 + $0x38] sm:$0xff]
    %v721 = vld [vmem:[#allocation5 + $0x40] sm:$0xff]
    %v722 = vld [vmem:[#allocation5 + $0x48] sm:$0xff]
    %v723 = vld [vmem:[#allocation5 + $0x50] sm:$0xff]
    %v724 = vld [vmem:[#allocation5 + $0x58] sm:$0xff]
    %v725 = vld [vmem:[#allocation5 + $0x60] sm:$0xff]
    %v726 = vld [vmem:[#allocation5 + $0x68] sm:$0xff]
    %v727 = vld [vmem:[#allocation5 + $0x70] sm:$0xff]
    %v728 = vld [vmem:[#allocation5 + $0x78] sm:$0xff]
    %v729 = vrot.slane %v71, 7
    %v730 = vrot.slane %v72, 7
    %v731 = vrot.slane %v73, 7
    %v732 = vrot.slane %v74, 7
    %v733 = vrot.slane %v75, 7
    %v734 = vrot.slane %v76, 7
    %v735 = vrot.slane %v77, 7
    %v736 = vrot.slane %v78, 7
    %v737 = vrot.slane %v79, 7
    %v738 = vrot.slane %v80, 7
    %v739 = vrot.slane %v81, 7
    %v740 = vrot.slane %v82, 7
    %v741 = vrot.slane %v83, 7
    %v742 = vrot.slane %v84, 7
    %v743 = vrot.slane %v85, 7
    %v744 = vrot.slane %v86, 7
    %v745 = vrot.slane %v87, 7
    %v746 = vrot.slane %v88, 7
    %v747 = vrot.slane %v89, 7
    %v748 = vrot.slane %v90, 7
    %v749 = vrot.slane %v91, 7
    %v750 = vrot.slane %v92, 7
    %v751 = vrot.slane %v93, 7
    %v752 = vrot.slane %v94, 7
    %v753 = vrot.slane %v95, 7
    %v754 = vrot.slane %v96, 7
    %v755 = vrot.slane %v97, 7
    %v756 = vrot.slane %v98, 7
    %v757 = vrot.slane %v99, 7
    %v758 = vrot.slane %v100, 7
    %v759 = vrot.slane %v101, 7
    %v760 = vrot.slane %v102, 7
    %vm761 = vcmp.lt.s32.totalorder %v104, 1
    %v762 = vsel %vm761, %v759, %v760
    %v763 = vsel %vm761, %v758, %v759
    %v764 = vsel %vm761, %v757, %v758
    %v765 = vsel %vm761, %v756, %v757
    %v766 = vsel %vm761, %v755, %v756
    %v767 = vsel %vm761, %v754, %v755
    %v768 = vsel %vm761, %v753, %v754
    %v769 = vsel %vm761, %v752, %v753
    %v770 = vsel %vm761, %v751, %v752
    %v771 = vsel %vm761, %v750, %v751
    %v772 = vsel %vm761, %v749, %v750
    %v773 = vsel %vm761, %v748, %v749
    %v774 = vsel %vm761, %v747, %v748
    %v775 = vsel %vm761, %v746, %v747
    %v776 = vsel %vm761, %v745, %v746
    %v777 = vsel %vm761, %v744, %v745
    %v778 = vsel %vm761, %v743, %v744
    %v779 = vsel %vm761, %v742, %v743
    %v780 = vsel %vm761, %v741, %v742
    %v781 = vsel %vm761, %v740, %v741
    %v782 = vsel %vm761, %v739, %v740
    %v783 = vsel %vm761, %v738, %v739
    %v784 = vsel %vm761, %v737, %v738
    %v785 = vsel %vm761, %v736, %v737
    %v786 = vsel %vm761, %v735, %v736
    %v787 = vsel %vm761, %v734, %v735
    %v788 = vsel %vm761, %v733, %v734
    %v789 = vsel %vm761, %v732, %v733
    %v790 = vsel %vm761, %v731, %v732
    %v791 = vsel %vm761, %v730, %v731
    %v792 = vsel %vm761, %v729, %v730
    %v793 = vsel %vm761, %v760, %v729
    %v794 = vmul.f32 %v793, %v584
    %v795 = vmul.f32 %v792, %v585
    %v796 = vmul.f32 %v791, %v586
    %v797 = vmul.f32 %v790, %v587
    %v798 = vmul.f32 %v789, %v588
    %v799 = vmul.f32 %v788, %v589
    %v800 = vmul.f32 %v787, %v590
    %v801 = vmul.f32 %v786, %v591
    %v802 = vmul.f32 %v785, %v592
    %v803 = vmul.f32 %v784, %v593
    %v804 = vmul.f32 %v783, %v594
    %v805 = vmul.f32 %v782, %v595
    %v806 = vmul.f32 %v781, %v596
    %v807 = vmul.f32 %v780, %v597
    %v808 = vmul.f32 %v779, %v598
    %v809 = vmul.f32 %v778, %v599
    %v810 = vmul.f32 %v777, %v600
    %v811 = vmul.f32 %v776, %v601
    %v812 = vmul.f32 %v775, %v602
    %v813 = vmul.f32 %v774, %v603
    %v814 = vmul.f32 %v773, %v604
    %v815 = vmul.f32 %v772, %v605
    %v816 = vmul.f32 %v771, %v606
    %v817 = vmul.f32 %v770, %v607
    %v818 = vmul.f32 %v769, %v608
    %v819 = vmul.f32 %v768, %v609
    %v820 = vmul.f32 %v767, %v610
    %v821 = vmul.f32 %v766, %v611
    %v822 = vmul.f32 %v765, %v612
    %v823 = vmul.f32 %v764, %v613
    %v824 = vmul.f32 %v763, %v614
    %v825 = vmul.f32 %v762, %v615
    %v826 = vrot.slane %v71, 1
    %v827 = vrot.slane %v72, 1
    %v828 = vrot.slane %v73, 1
    %v829 = vrot.slane %v74, 1
    %v830 = vrot.slane %v75, 1
    %v831 = vrot.slane %v76, 1
    %v832 = vrot.slane %v77, 1
    %v833 = vrot.slane %v78, 1
    %v834 = vrot.slane %v79, 1
    %v835 = vrot.slane %v80, 1
    %v836 = vrot.slane %v81, 1
    %v837 = vrot.slane %v82, 1
    %v838 = vrot.slane %v83, 1
    %v839 = vrot.slane %v84, 1
    %v840 = vrot.slane %v85, 1
    %v841 = vrot.slane %v86, 1
    %v842 = vrot.slane %v87, 1
    %v843 = vrot.slane %v88, 1
    %v844 = vrot.slane %v89, 1
    %v845 = vrot.slane %v90, 1
    %v846 = vrot.slane %v91, 1
    %v847 = vrot.slane %v92, 1
    %v848 = vrot.slane %v93, 1
    %v849 = vrot.slane %v94, 1
    %v850 = vrot.slane %v95, 1
    %v851 = vrot.slane %v96, 1
    %v852 = vrot.slane %v97, 1
    %v853 = vrot.slane %v98, 1
    %v854 = vrot.slane %v99, 1
    %v855 = vrot.slane %v100, 1
    %v856 = vrot.slane %v101, 1
    %v857 = vrot.slane %v102, 1
    %vm858 = vcmp.lt.s32.totalorder %v104, 7
    %v859 = vsel %vm858, %v856, %v857
    %v860 = vsel %vm858, %v855, %v856
    %v861 = vsel %vm858, %v854, %v855
    %v862 = vsel %vm858, %v853, %v854
    %v863 = vsel %vm858, %v852, %v853
    %v864 = vsel %vm858, %v851, %v852
    %v865 = vsel %vm858, %v850, %v851
    %v866 = vsel %vm858, %v849, %v850
    %v867 = vsel %vm858, %v848, %v849
    %v868 = vsel %vm858, %v847, %v848
    %v869 = vsel %vm858, %v846, %v847
    %v870 = vsel %vm858, %v845, %v846
    %v871 = vsel %vm858, %v844, %v845
    %v872 = vsel %vm858, %v843, %v844
    %v873 = vsel %vm858, %v842, %v843
    %v874 = vsel %vm858, %v841, %v842
    %v875 = vsel %vm858, %v840, %v841
    %v876 = vsel %vm858, %v839, %v840
    %v877 = vsel %vm858, %v838, %v839
    %v878 = vsel %vm858, %v837, %v838
    %v879 = vsel %vm858, %v836, %v837
    %v880 = vsel %vm858, %v835, %v836
    %v881 = vsel %vm858, %v834, %v835
    %v882 = vsel %vm858, %v833, %v834
    %v883 = vsel %vm858, %v832, %v833
    %v884 = vsel %vm858, %v831, %v832
    %v885 = vsel %vm858, %v830, %v831
    %v886 = vsel %vm858, %v829, %v830
    %v887 = vsel %vm858, %v828, %v829
    %v888 = vsel %vm858, %v827, %v828
    %v889 = vsel %vm858, %v826, %v827
    %v890 = vsel %vm858, %v857, %v826
    %v891 = vmul.f32 %v889, %v680
    %v892 = vmul.f32 %v888, %v681
    %v893 = vmul.f32 %v887, %v682
    %v894 = vmul.f32 %v886, %v683
    %v895 = vmul.f32 %v885, %v684
    %v896 = vmul.f32 %v884, %v685
    %v897 = vmul.f32 %v883, %v686
    %v898 = vmul.f32 %v882, %v687
    %v899 = vmul.f32 %v881, %v688
    %v900 = vmul.f32 %v880, %v689
    %v901 = vmul.f32 %v879, %v690
    %v902 = vmul.f32 %v878, %v691
    %v903 = vmul.f32 %v877, %v692
    %v904 = vmul.f32 %v876, %v693
    %v905 = vmul.f32 %v875, %v694
    %v906 = vmul.f32 %v874, %v695
    %v907 = vmul.f32 %v873, %v696
    %v908 = vmul.f32 %v872, %v697
    %v909 = vmul.f32 %v871, %v698
    %v910 = vmul.f32 %v870, %v699
    %v911 = vmul.f32 %v869, %v700
    %v912 = vmul.f32 %v868, %v701
    %v913 = vmul.f32 %v867, %v702
    %v914 = vmul.f32 %v866, %v703
    %v915 = vmul.f32 %v865, %v704
    %v916 = vmul.f32 %v864, %v705
    %v917 = vmul.f32 %v863, %v706
    %v918 = vmul.f32 %v862, %v707
    %v919 = vmul.f32 %v861, %v708
    %v920 = vmul.f32 %v860, %v709
    %v921 = vmul.f32 %v859, %v710
    %v922 = vmul.f32 %v890, %v711
    %923 = vrot.lane.b32.xlu0 %v71, 32
    %v924 = vpop.permute.xlu0 %923
    %925 = vrot.lane.b32.xlu0 %v72, 32
    %v926 = vpop.permute.xlu0 %925
    %927 = vrot.lane.b32.xlu0 %v73, 32
    %v928 = vpop.permute.xlu0 %927
    %929 = vrot.lane.b32.xlu0 %v74, 32
    %v930 = vpop.permute.xlu0 %929
    %931 = vrot.lane.b32.xlu0 %v75, 32
    %v932 = vpop.permute.xlu0 %931
    %933 = vrot.lane.b32.xlu0 %v76, 32
    %v934 = vpop.permute.xlu0 %933
    %935 = vrot.lane.b32.xlu0 %v77, 32
    %v936 = vpop.permute.xlu0 %935
    %937 = vrot.lane.b32.xlu0 %v78, 32
    %v938 = vpop.permute.xlu0 %937
    %939 = vrot.lane.b32.xlu0 %v79, 32
    %v940 = vpop.permute.xlu0 %939
    %941 = vrot.lane.b32.xlu0 %v80, 32
    %v942 = vpop.permute.xlu0 %941
    %943 = vrot.lane.b32.xlu0 %v81, 32
    %v944 = vpop.permute.xlu0 %943
    %945 = vrot.lane.b32.xlu0 %v82, 32
    %v946 = vpop.permute.xlu0 %945
    %947 = vrot.lane.b32.xlu0 %v83, 32
    %v948 = vpop.permute.xlu0 %947
    %949 = vrot.lane.b32.xlu0 %v84, 32
    %v950 = vpop.permute.xlu0 %949
    %951 = vrot.lane.b32.xlu0 %v85, 32
    %v952 = vpop.permute.xlu0 %951
    %953 = vrot.lane.b32.xlu0 %v86, 32
    %v954 = vpop.permute.xlu0 %953
    %955 = vrot.lane.b32.xlu0 %v87, 32
    %v956 = vpop.permute.xlu0 %955
    %957 = vrot.lane.b32.xlu0 %v88, 32
    %v958 = vpop.permute.xlu0 %957
    %959 = vrot.lane.b32.xlu0 %v89, 32
    %v960 = vpop.permute.xlu0 %959
    %961 = vrot.lane.b32.xlu0 %v90, 32
    %v962 = vpop.permute.xlu0 %961
    %963 = vrot.lane.b32.xlu0 %v91, 32
    %v964 = vpop.permute.xlu0 %963
    %965 = vrot.lane.b32.xlu0 %v92, 32
    %v966 = vpop.permute.xlu0 %965
    %967 = vrot.lane.b32.xlu0 %v93, 32
    %v968 = vpop.permute.xlu0 %967
    %969 = vrot.lane.b32.xlu0 %v94, 32
    %v970 = vpop.permute.xlu0 %969
    %971 = vrot.lane.b32.xlu0 %v95, 32
    %v972 = vpop.permute.xlu0 %971
    %973 = vrot.lane.b32.xlu0 %v96, 32
    %v974 = vpop.permute.xlu0 %973
    %975 = vrot.lane.b32.xlu0 %v97, 32
    %v976 = vpop.permute.xlu0 %975
    %977 = vrot.lane.b32.xlu0 %v98, 32
    %v978 = vpop.permute.xlu0 %977
    %979 = vrot.lane.b32.xlu0 %v99, 32
    %v980 = vpop.permute.xlu0 %979
    %981 = vrot.lane.b32.xlu0 %v100, 32
    %v982 = vpop.permute.xlu0 %981
    %983 = vrot.lane.b32.xlu0 %v101, 32
    %v984 = vpop.permute.xlu0 %983
    %985 = vrot.lane.b32.xlu0 %v102, 32
    %v986 = vpop.permute.xlu0 %985
    %v987 = vadd.f32 %v794, %v924
    %v988 = vadd.f32 %v795, %v926
    %v989 = vadd.f32 %v796, %v928
    %v990 = vadd.f32 %v797, %v930
    %v991 = vadd.f32 %v798, %v932
    %v992 = vadd.f32 %v799, %v934
    %v993 = vadd.f32 %v800, %v936
    %v994 = vadd.f32 %v801, %v938
    %v995 = vadd.f32 %v802, %v940
    %v996 = vadd.f32 %v803, %v942
    %v997 = vadd.f32 %v804, %v944
    %v998 = vadd.f32 %v805, %v946
    %v999 = vadd.f32 %v806, %v948
    %v1000 = vadd.f32 %v807, %v950
    %v1001 = vadd.f32 %v808, %v952
    %v1002 = vadd.f32 %v809, %v954
    %v1003 = vadd.f32 %v810, %v956
    %v1004 = vadd.f32 %v811, %v958
    %v1005 = vadd.f32 %v812, %v960
    %v1006 = vadd.f32 %v813, %v962
    %v1007 = vadd.f32 %v814, %v964
    %v1008 = vadd.f32 %v815, %v966
    %v1009 = vadd.f32 %v816, %v968
    %v1010 = vadd.f32 %v817, %v970
    %v1011 = vadd.f32 %v818, %v972
    %v1012 = vadd.f32 %v819, %v974
    %v1013 = vadd.f32 %v820, %v976
    %v1014 = vadd.f32 %v821, %v978
    %v1015 = vadd.f32 %v822, %v980
    %v1016 = vadd.f32 %v823, %v982
    %v1017 = vadd.f32 %v824, %v984
    %v1018 = vadd.f32 %v825, %v986
    %1019 = vrot.lane.b32.xlu0 %v891, 64
    %v1020 = vpop.permute.xlu0 %1019
    %1021 = vrot.lane.b32.xlu0 %v892, 64
    %v1022 = vpop.permute.xlu0 %1021
    %1023 = vrot.lane.b32.xlu0 %v893, 64
    %v1024 = vpop.permute.xlu0 %1023
    %1025 = vrot.lane.b32.xlu0 %v894, 64
    %v1026 = vpop.permute.xlu0 %1025
    %1027 = vrot.lane.b32.xlu0 %v895, 64
    %v1028 = vpop.permute.xlu0 %1027
    %1029 = vrot.lane.b32.xlu0 %v896, 64
    %v1030 = vpop.permute.xlu0 %1029
    %1031 = vrot.lane.b32.xlu0 %v897, 64
    %v1032 = vpop.permute.xlu0 %1031
    %1033 = vrot.lane.b32.xlu0 %v898, 64
    %v1034 = vpop.permute.xlu0 %1033
    %1035 = vrot.lane.b32.xlu0 %v899, 64
    %v1036 = vpop.permute.xlu0 %1035
    %1037 = vrot.lane.b32.xlu0 %v900, 64
    %v1038 = vpop.permute.xlu0 %1037
    %1039 = vrot.lane.b32.xlu0 %v901, 64
    %v1040 = vpop.permute.xlu0 %1039
    %1041 = vrot.lane.b32.xlu0 %v902, 64
    %v1042 = vpop.permute.xlu0 %1041
    %1043 = vrot.lane.b32.xlu0 %v903, 64
    %v1044 = vpop.permute.xlu0 %1043
    %1045 = vrot.lane.b32.xlu0 %v904, 64
    %v1046 = vpop.permute.xlu0 %1045
    %1047 = vrot.lane.b32.xlu0 %v905, 64
    %v1048 = vpop.permute.xlu0 %1047
    %1049 = vrot.lane.b32.xlu0 %v906, 64
    %v1050 = vpop.permute.xlu0 %1049
    %1051 = vrot.lane.b32.xlu0 %v907, 64
    %v1052 = vpop.permute.xlu0 %1051
    %1053 = vrot.lane.b32.xlu0 %v908, 64
    %v1054 = vpop.permute.xlu0 %1053
    %1055 = vrot.lane.b32.xlu0 %v909, 64
    %v1056 = vpop.permute.xlu0 %1055
    %1057 = vrot.lane.b32.xlu0 %v910, 64
    %v1058 = vpop.permute.xlu0 %1057
    %1059 = vrot.lane.b32.xlu0 %v911, 64
    %v1060 = vpop.permute.xlu0 %1059
    %1061 = vrot.lane.b32.xlu0 %v912, 64
    %v1062 = vpop.permute.xlu0 %1061
    %1063 = vrot.lane.b32.xlu0 %v913, 64
    %v1064 = vpop.permute.xlu0 %1063
    %1065 = vrot.lane.b32.xlu0 %v914, 64
    %v1066 = vpop.permute.xlu0 %1065
    %1067 = vrot.lane.b32.xlu0 %v915, 64
    %v1068 = vpop.permute.xlu0 %1067
    %1069 = vrot.lane.b32.xlu0 %v916, 64
    %v1070 = vpop.permute.xlu0 %1069
    %1071 = vrot.lane.b32.xlu0 %v917, 64
    %v1072 = vpop.permute.xlu0 %1071
    %1073 = vrot.lane.b32.xlu0 %v918, 64
    %v1074 = vpop.permute.xlu0 %1073
    %1075 = vrot.lane.b32.xlu0 %v919, 64
    %v1076 = vpop.permute.xlu0 %1075
    %1077 = vrot.lane.b32.xlu0 %v920, 64
    %v1078 = vpop.permute.xlu0 %1077
    %1079 = vrot.lane.b32.xlu0 %v921, 64
    %v1080 = vpop.permute.xlu0 %1079
    %1081 = vrot.lane.b32.xlu0 %v922, 64
    %v1082 = vpop.permute.xlu0 %1081
    %v1083 = vadd.f32 %v987, %v1020
    %v1084 = vadd.f32 %v988, %v1022
    %v1085 = vadd.f32 %v989, %v1024
    %v1086 = vadd.f32 %v990, %v1026
    %v1087 = vadd.f32 %v991, %v1028
    %v1088 = vadd.f32 %v992, %v1030
    %v1089 = vadd.f32 %v993, %v1032
    %v1090 = vadd.f32 %v994, %v1034
    %v1091 = vadd.f32 %v995, %v1036
    %v1092 = vadd.f32 %v996, %v1038
    %v1093 = vadd.f32 %v997, %v1040
    %v1094 = vadd.f32 %v998, %v1042
    %v1095 = vadd.f32 %v999, %v1044
    %v1096 = vadd.f32 %v1000, %v1046
    %v1097 = vadd.f32 %v1001, %v1048
    %v1098 = vadd.f32 %v1002, %v1050
    %v1099 = vadd.f32 %v1003, %v1052
    %v1100 = vadd.f32 %v1004, %v1054
    %v1101 = vadd.f32 %v1005, %v1056
    %v1102 = vadd.f32 %v1006, %v1058
    %v1103 = vadd.f32 %v1007, %v1060
    %v1104 = vadd.f32 %v1008, %v1062
    %v1105 = vadd.f32 %v1009, %v1064
    %v1106 = vadd.f32 %v1010, %v1066
    %v1107 = vadd.f32 %v1011, %v1068
    %v1108 = vadd.f32 %v1012, %v1070
    %v1109 = vadd.f32 %v1013, %v1072
    %v1110 = vadd.f32 %v1014, %v1074
    %v1111 = vadd.f32 %v1015, %v1076
    %v1112 = vadd.f32 %v1016, %v1078
    %v1113 = vadd.f32 %v1017, %v1080
    %v1114 = vadd.f32 %v1018, %v1082
    %1115 = vmatprep.subr.mxu0 0.0
    %1116 = vmatpush1.msra.mxu0 %v728
    %1117 = vmatprep.subr.mxu0 0.0
    %1118 = vmatpush1.msra.mxu0 %v727
    %1119 = vmatprep.subr.mxu0 0.0
    %1120 = vmatpush1.msra.mxu0 %v726
    %1121 = vmatprep.subr.mxu0 0.0
    %1122 = vmatpush1.msra.mxu0 %v725
    %1123 = vmatprep.subr.mxu0 0.0
    %1124 = vmatpush1.msra.mxu0 %v724
    %1125 = vmatprep.subr.mxu0 0.0
    %1126 = vmatpush1.msra.mxu0 %v723
    %1127 = vmatprep.subr.mxu0 0.0
    %1128 = vmatpush1.msra.mxu0 %v722
    %1129 = vmatprep.subr.mxu0 0.0
    %1130 = vmatpush1.msra.mxu0 %v721
    %1131 = vmatprep.subr.mxu0 0.0
    %1132 = vmatpush1.msra.mxu0 %v720
    %1133 = vmatprep.subr.mxu0 0.0
    %1134 = vmatpush1.msra.mxu0 %v719
    %1135 = vmatprep.subr.mxu0 0.0
    %1136 = vmatpush1.msra.mxu0 %v718
    %1137 = vmatprep.subr.mxu0 0.0
    %1138 = vmatpush1.msra.mxu0 %v717
    %1139 = vmatprep.subr.mxu0 0.0
    %1140 = vmatpush1.msra.mxu0 %v716
    %1141 = vmatprep.subr.mxu0 0.0
    %1142 = vmatpush1.msra.mxu0 %v715
    %1143 = vmatprep.subr.mxu0 0.0
    %1144 = vmatpush1.msra.mxu0 %v714
    %1145 = vmatprep.subr.mxu0 0.0
    %1146 = vmatpush1.msra.mxu0 %v713
    %1147 = vmatprep.subr.mxu0 0.0
    %1148 = vmatpush2.msra.mxu0 0.0
    %1149 = vmatprep.subr.mxu0 0.0
    %1150 = vmatpush2.msra.mxu0 0.0
    %1151 = vmatprep.subr.mxu0 0.0
    %1152 = vmatpush2.msra.mxu0 0.0
    %1153 = vmatprep.subr.mxu0 0.0
    %1154 = vmatpush2.msra.mxu0 0.0
    %1155 = vmatprep.subr.mxu0 0.0
    %1156 = vmatpush2.msra.mxu0 0.0
    %1157 = vmatprep.subr.mxu0 0.0
    %1158 = vmatpush2.msra.mxu0 0.0
    %1159 = vmatprep.subr.mxu0 0.0
    %1160 = vmatpush2.msra.mxu0 0.0
    %1161 = vmatprep.subr.mxu0 0.0
    %1162 = vmatpush2.msra.mxu0 0.0
    %1163 = vmatprep.subr.mxu0 0.0
    %1164 = vmatpush2.msra.mxu0 0.0
    %1165 = vmatprep.subr.mxu0 0.0
    %1166 = vmatpush2.msra.mxu0 0.0
    %1167 = vmatprep.subr.mxu0 0.0
    %1168 = vmatpush2.msra.mxu0 0.0
    %1169 = vmatprep.subr.mxu0 0.0
    %1170 = vmatpush2.msra.mxu0 0.0
    %1171 = vmatprep.subr.mxu0 0.0
    %1172 = vmatpush2.msra.mxu0 0.0
    %1173 = vmatprep.subr.mxu0 0.0
    %1174 = vmatpush2.msra.mxu0 0.0
    %1175 = vmatprep.subr.mxu0 0.0
    %1176 = vmatpush2.msra.mxu0 0.0
    %1177 = vmatprep.subr.mxu0 0.0
    %1178 = vmatpush2.msra.mxu0 0.0
    %1179 = vmatprep.mubr.f32.mxu0 0.0
    %1180 = vmatmul.mubr.f32.gmra.mxu0 %v1083
    %v1181 = vpop.f32.mrf.mxu0
    %v1182 = vadd.f32 0.0, %v1181
    %v1183 = vpop.f32.mrf.mxu0
    %1184 = vmatprep.mubr.f32.mxu0 0.0
    %1185 = vmatmul.mubr.f32.gmra.mxu0 %v1084
    %v1186 = vpop.f32.mrf.mxu0
    %v1187 = vadd.f32 0.0, %v1186
    %v1188 = vpop.f32.mrf.mxu0
    %1189 = vmatprep.mubr.f32.mxu0 0.0
    %1190 = vmatmul.mubr.f32.gmra.mxu0 %v1085
    %v1191 = vpop.f32.mrf.mxu0
    %v1192 = vadd.f32 0.0, %v1191
    %v1193 = vpop.f32.mrf.mxu0
    %1194 = vmatprep.mubr.f32.mxu0 0.0
    %1195 = vmatmul.mubr.f32.gmra.mxu0 %v1086
    %v1196 = vpop.f32.mrf.mxu0
    %v1197 = vadd.f32 0.0, %v1196
    %v1198 = vpop.f32.mrf.mxu0
    %1199 = vmatprep.mubr.f32.mxu0 0.0
    %1200 = vmatmul.mubr.f32.gmra.mxu0 %v1087
    %v1201 = vpop.f32.mrf.mxu0
    %v1202 = vadd.f32 0.0, %v1201
    %v1203 = vpop.f32.mrf.mxu0
    %1204 = vmatprep.mubr.f32.mxu0 0.0
    %1205 = vmatmul.mubr.f32.gmra.mxu0 %v1088
    %v1206 = vpop.f32.mrf.mxu0
    %v1207 = vadd.f32 0.0, %v1206
    %v1208 = vpop.f32.mrf.mxu0
    %1209 = vmatprep.mubr.f32.mxu0 0.0
    %1210 = vmatmul.mubr.f32.gmra.mxu0 %v1089
    %v1211 = vpop.f32.mrf.mxu0
    %v1212 = vadd.f32 0.0, %v1211
    %v1213 = vpop.f32.mrf.mxu0
    %1214 = vmatprep.mubr.f32.mxu0 0.0
    %1215 = vmatmul.mubr.f32.gmra.mxu0 %v1090
    %v1216 = vpop.f32.mrf.mxu0
    %v1217 = vadd.f32 0.0, %v1216
    %v1218 = vpop.f32.mrf.mxu0
    %1219 = vmatprep.mubr.f32.mxu0 0.0
    %1220 = vmatmul.mubr.f32.gmra.mxu0 %v1091
    %v1221 = vpop.f32.mrf.mxu0
    %v1222 = vadd.f32 0.0, %v1221
    %v1223 = vpop.f32.mrf.mxu0
    %1224 = vmatprep.mubr.f32.mxu0 0.0
    %1225 = vmatmul.mubr.f32.gmra.mxu0 %v1092
    %v1226 = vpop.f32.mrf.mxu0
    %v1227 = vadd.f32 0.0, %v1226
    %v1228 = vpop.f32.mrf.mxu0
    %1229 = vmatprep.mubr.f32.mxu0 0.0
    %1230 = vmatmul.mubr.f32.gmra.mxu0 %v1093
    %v1231 = vpop.f32.mrf.mxu0
    %v1232 = vadd.f32 0.0, %v1231
    %v1233 = vpop.f32.mrf.mxu0
    %1234 = vmatprep.mubr.f32.mxu0 0.0
    %1235 = vmatmul.mubr.f32.gmra.mxu0 %v1094
    %v1236 = vpop.f32.mrf.mxu0
    %v1237 = vadd.f32 0.0, %v1236
    %v1238 = vpop.f32.mrf.mxu0
    %1239 = vmatprep.mubr.f32.mxu0 0.0
    %1240 = vmatmul.mubr.f32.gmra.mxu0 %v1095
    %v1241 = vpop.f32.mrf.mxu0
    %v1242 = vadd.f32 0.0, %v1241
    %v1243 = vpop.f32.mrf.mxu0
    %1244 = vmatprep.mubr.f32.mxu0 0.0
    %1245 = vmatmul.mubr.f32.gmra.mxu0 %v1096
    %v1246 = vpop.f32.mrf.mxu0
    %v1247 = vadd.f32 0.0, %v1246
    %v1248 = vpop.f32.mrf.mxu0
    %1249 = vmatprep.mubr.f32.mxu0 0.0
    %1250 = vmatmul.mubr.f32.gmra.mxu0 %v1097
    %v1251 = vpop.f32.mrf.mxu0
    %v1252 = vadd.f32 0.0, %v1251
    %v1253 = vpop.f32.mrf.mxu0
    %1254 = vmatprep.mubr.f32.mxu0 0.0
    %1255 = vmatmul.mubr.f32.gmra.mxu0 %v1098
    %v1256 = vpop.f32.mrf.mxu0
    %v1257 = vadd.f32 0.0, %v1256
    %v1258 = vpop.f32.mrf.mxu0
    %1259 = vmatprep.mubr.f32.mxu0 0.0
    %1260 = vmatmul.mubr.f32.gmra.mxu0 %v1099
    %v1261 = vpop.f32.mrf.mxu0
    %v1262 = vadd.f32 0.0, %v1261
    %v1263 = vpop.f32.mrf.mxu0
    %1264 = vmatprep.mubr.f32.mxu0 0.0
    %1265 = vmatmul.mubr.f32.gmra.mxu0 %v1100
    %v1266 = vpop.f32.mrf.mxu0
    %v1267 = vadd.f32 0.0, %v1266
    %v1268 = vpop.f32.mrf.mxu0
    %1269 = vmatprep.mubr.f32.mxu0 0.0
    %1270 = vmatmul.mubr.f32.gmra.mxu0 %v1101
    %v1271 = vpop.f32.mrf.mxu0
    %v1272 = vadd.f32 0.0, %v1271
    %v1273 = vpop.f32.mrf.mxu0
    %1274 = vmatprep.mubr.f32.mxu0 0.0
    %1275 = vmatmul.mubr.f32.gmra.mxu0 %v1102
    %v1276 = vpop.f32.mrf.mxu0
    %v1277 = vadd.f32 0.0, %v1276
    %v1278 = vpop.f32.mrf.mxu0
    %1279 = vmatprep.mubr.f32.mxu0 0.0
    %1280 = vmatmul.mubr.f32.gmra.mxu0 %v1103
    %v1281 = vpop.f32.mrf.mxu0
    %v1282 = vadd.f32 0.0, %v1281
    %v1283 = vpop.f32.mrf.mxu0
    %1284 = vmatprep.mubr.f32.mxu0 0.0
    %1285 = vmatmul.mubr.f32.gmra.mxu0 %v1104
    %v1286 = vpop.f32.mrf.mxu0
    %v1287 = vadd.f32 0.0, %v1286
    %v1288 = vpop.f32.mrf.mxu0
    %1289 = vmatprep.mubr.f32.mxu0 0.0
    %1290 = vmatmul.mubr.f32.gmra.mxu0 %v1105
    %v1291 = vpop.f32.mrf.mxu0
    %v1292 = vadd.f32 0.0, %v1291
    %v1293 = vpop.f32.mrf.mxu0
    %1294 = vmatprep.mubr.f32.mxu0 0.0
    %1295 = vmatmul.mubr.f32.gmra.mxu0 %v1106
    %v1296 = vpop.f32.mrf.mxu0
    %v1297 = vadd.f32 0.0, %v1296
    %v1298 = vpop.f32.mrf.mxu0
    %1299 = vmatprep.mubr.f32.mxu0 0.0
    %1300 = vmatmul.mubr.f32.gmra.mxu0 %v1107
    %v1301 = vpop.f32.mrf.mxu0
    %v1302 = vadd.f32 0.0, %v1301
    %v1303 = vpop.f32.mrf.mxu0
    %1304 = vmatprep.mubr.f32.mxu0 0.0
    %1305 = vmatmul.mubr.f32.gmra.mxu0 %v1108
    %v1306 = vpop.f32.mrf.mxu0
    %v1307 = vadd.f32 0.0, %v1306
    %v1308 = vpop.f32.mrf.mxu0
    %1309 = vmatprep.mubr.f32.mxu0 0.0
    %1310 = vmatmul.mubr.f32.gmra.mxu0 %v1109
    %v1311 = vpop.f32.mrf.mxu0
    %v1312 = vadd.f32 0.0, %v1311
    %v1313 = vpop.f32.mrf.mxu0
    %1314 = vmatprep.mubr.f32.mxu0 0.0
    %1315 = vmatmul.mubr.f32.gmra.mxu0 %v1110
    %v1316 = vpop.f32.mrf.mxu0
    %v1317 = vadd.f32 0.0, %v1316
    %v1318 = vpop.f32.mrf.mxu0
    %1319 = vmatprep.mubr.f32.mxu0 0.0
    %1320 = vmatmul.mubr.f32.gmra.mxu0 %v1111
    %v1321 = vpop.f32.mrf.mxu0
    %v1322 = vadd.f32 0.0, %v1321
    %v1323 = vpop.f32.mrf.mxu0
    %1324 = vmatprep.mubr.f32.mxu0 0.0
    %1325 = vmatmul.mubr.f32.gmra.mxu0 %v1112
    %v1326 = vpop.f32.mrf.mxu0
    %v1327 = vadd.f32 0.0, %v1326
    %v1328 = vpop.f32.mrf.mxu0
    %1329 = vmatprep.mubr.f32.mxu0 0.0
    %1330 = vmatmul.mubr.f32.gmra.mxu0 %v1113
    %v1331 = vpop.f32.mrf.mxu0
    %v1332 = vadd.f32 0.0, %v1331
    %v1333 = vpop.f32.mrf.mxu0
    %1334 = vmatprep.mubr.f32.mxu0 0.0
    %1335 = vmatmul.mubr.f32.gmra.mxu0 %v1114
    %v1336 = vpop.f32.mrf.mxu0
    %v1337 = vadd.f32 0.0, %v1336
    %v1338 = vpop.f32.mrf.mxu0
    %1339 = vdwg.mxu0
    %v1340 = vlaneseq
    %v1341 = vshrl.u32 %v1340, 7
    %v1342 = vsub.s32 0, %v1341
    %v1343 = vrot.slane %v712, %v1342
    %v1344 = vmul.f32 %v1182, %v1343
    %v1345 = vmul.f32 %v1187, %v1343
    %v1346 = vmul.f32 %v1192, %v1343
    %v1347 = vmul.f32 %v1197, %v1343
    %v1348 = vmul.f32 %v1202, %v1343
    %v1349 = vmul.f32 %v1207, %v1343
    %v1350 = vmul.f32 %v1212, %v1343
    %v1351 = vmul.f32 %v1217, %v1343
    %v1352 = vmul.f32 %v1222, %v1343
    %v1353 = vmul.f32 %v1227, %v1343
    %v1354 = vmul.f32 %v1232, %v1343
    %v1355 = vmul.f32 %v1237, %v1343
    %v1356 = vmul.f32 %v1242, %v1343
    %v1357 = vmul.f32 %v1247, %v1343
    %v1358 = vmul.f32 %v1252, %v1343
    %v1359 = vmul.f32 %v1257, %v1343
    %v1360 = vmul.f32 %v1262, %v1343
    %v1361 = vmul.f32 %v1267, %v1343
    %v1362 = vmul.f32 %v1272, %v1343
    %v1363 = vmul.f32 %v1277, %v1343
    %v1364 = vmul.f32 %v1282, %v1343
    %v1365 = vmul.f32 %v1287, %v1343
    %v1366 = vmul.f32 %v1292, %v1343
    %v1367 = vmul.f32 %v1297, %v1343
    %v1368 = vmul.f32 %v1302, %v1343
    %v1369 = vmul.f32 %v1307, %v1343
    %v1370 = vmul.f32 %v1312, %v1343
    %v1371 = vmul.f32 %v1317, %v1343
    %v1372 = vmul.f32 %v1322, %v1343
    %v1373 = vmul.f32 %v1327, %v1343
    %v1374 = vmul.f32 %v1332, %v1343
    %v1375 = vmul.f32 %v1337, %v1343
    %v1376 = vlaneseq
    %v1377 = vshrl.u32 %v1376, 7
    %v1378 = vsub.s32 1, %v1377
    %v1379 = vrot.slane %v712, %v1378
    %v1380 = vadd.f32 %v1344, %v1379
    %v1381 = vadd.f32 %v1345, %v1379
    %v1382 = vadd.f32 %v1346, %v1379
    %v1383 = vadd.f32 %v1347, %v1379
    %v1384 = vadd.f32 %v1348, %v1379
    %v1385 = vadd.f32 %v1349, %v1379
    %v1386 = vadd.f32 %v1350, %v1379
    %v1387 = vadd.f32 %v1351, %v1379
    %v1388 = vadd.f32 %v1352, %v1379
    %v1389 = vadd.f32 %v1353, %v1379
    %v1390 = vadd.f32 %v1354, %v1379
    %v1391 = vadd.f32 %v1355, %v1379
    %v1392 = vadd.f32 %v1356, %v1379
    %v1393 = vadd.f32 %v1357, %v1379
    %v1394 = vadd.f32 %v1358, %v1379
    %v1395 = vadd.f32 %v1359, %v1379
    %v1396 = vadd.f32 %v1360, %v1379
    %v1397 = vadd.f32 %v1361, %v1379
    %v1398 = vadd.f32 %v1362, %v1379
    %v1399 = vadd.f32 %v1363, %v1379
    %v1400 = vadd.f32 %v1364, %v1379
    %v1401 = vadd.f32 %v1365, %v1379
    %v1402 = vadd.f32 %v1366, %v1379
    %v1403 = vadd.f32 %v1367, %v1379
    %v1404 = vadd.f32 %v1368, %v1379
    %v1405 = vadd.f32 %v1369, %v1379
    %v1406 = vadd.f32 %v1370, %v1379
    %v1407 = vadd.f32 %v1371, %v1379
    %v1408 = vadd.f32 %v1372, %v1379
    %v1409 = vadd.f32 %v1373, %v1379
    %v1410 = vadd.f32 %v1374, %v1379
    %v1411 = vadd.f32 %v1375, %v1379
    %v1412 = vmax.f32 %v1380, 0.0
    %v1413 = vmax.f32 %v1381, 0.0
    %v1414 = vmax.f32 %v1382, 0.0
    %v1415 = vmax.f32 %v1383, 0.0
    %v1416 = vmax.f32 %v1384, 0.0
    %v1417 = vmax.f32 %v1385, 0.0
    %v1418 = vmax.f32 %v1386, 0.0
    %v1419 = vmax.f32 %v1387, 0.0
    %v1420 = vmax.f32 %v1388, 0.0
    %v1421 = vmax.f32 %v1389, 0.0
    %v1422 = vmax.f32 %v1390, 0.0
    %v1423 = vmax.f32 %v1391, 0.0
    %v1424 = vmax.f32 %v1392, 0.0
    %v1425 = vmax.f32 %v1393, 0.0
    %v1426 = vmax.f32 %v1394, 0.0
    %v1427 = vmax.f32 %v1395, 0.0
    %v1428 = vmax.f32 %v1396, 0.0
    %v1429 = vmax.f32 %v1397, 0.0
    %v1430 = vmax.f32 %v1398, 0.0
    %v1431 = vmax.f32 %v1399, 0.0
    %v1432 = vmax.f32 %v1400, 0.0
    %v1433 = vmax.f32 %v1401, 0.0
    %v1434 = vmax.f32 %v1402, 0.0
    %v1435 = vmax.f32 %v1403, 0.0
    %v1436 = vmax.f32 %v1404, 0.0
    %v1437 = vmax.f32 %v1405, 0.0
    %v1438 = vmax.f32 %v1406, 0.0
    %v1439 = vmax.f32 %v1407, 0.0
    %v1440 = vmax.f32 %v1408, 0.0
    %v1441 = vmax.f32 %v1409, 0.0
    %v1442 = vmax.f32 %v1410, 0.0
    %v1443 = vmax.f32 %v1411, 0.0
    %s1444 = scalar_lea.vmem [#allocation5], 128
    %v1445 = vld [vmem:[%s1444] sm:$0xff]
    %v1446 = vld [vmem:[%s1444 + $0x8] sm:$0xff]
    %v1447 = vld [vmem:[%s1444 + $0x10] sm:$0xff]
    %v1448 = vld [vmem:[%s1444 + $0x18] sm:$0xff]
    %v1449 = vld [vmem:[%s1444 + $0x20] sm:$0xff]
    %v1450 = vld [vmem:[%s1444 + $0x28] sm:$0xff]
    %v1451 = vld [vmem:[%s1444 + $0x30] sm:$0xff]
    %v1452 = vld [vmem:[%s1444 + $0x38] sm:$0xff]
    %v1453 = vld [vmem:[%s1444 + $0x40] sm:$0xff]
    %v1454 = vld [vmem:[%s1444 + $0x48] sm:$0xff]
    %v1455 = vld [vmem:[%s1444 + $0x50] sm:$0xff]
    %v1456 = vld [vmem:[%s1444 + $0x58] sm:$0xff]
    %v1457 = vld [vmem:[%s1444 + $0x60] sm:$0xff]
    %v1458 = vld [vmem:[%s1444 + $0x68] sm:$0xff]
    %v1459 = vld [vmem:[%s1444 + $0x70] sm:$0xff]
    %v1460 = vld [vmem:[%s1444 + $0x78] sm:$0xff]
    %v1461 = vrot.slane %v1412, 7
    %v1462 = vrot.slane %v1413, 7
    %v1463 = vrot.slane %v1414, 7
    %v1464 = vrot.slane %v1415, 7
    %v1465 = vrot.slane %v1416, 7
    %v1466 = vrot.slane %v1417, 7
    %v1467 = vrot.slane %v1418, 7
    %v1468 = vrot.slane %v1419, 7
    %v1469 = vrot.slane %v1420, 7
    %v1470 = vrot.slane %v1421, 7
    %v1471 = vrot.slane %v1422, 7
    %v1472 = vrot.slane %v1423, 7
    %v1473 = vrot.slane %v1424, 7
    %v1474 = vrot.slane %v1425, 7
    %v1475 = vrot.slane %v1426, 7
    %v1476 = vrot.slane %v1427, 7
    %v1477 = vrot.slane %v1428, 7
    %v1478 = vrot.slane %v1429, 7
    %v1479 = vrot.slane %v1430, 7
    %v1480 = vrot.slane %v1431, 7
    %v1481 = vrot.slane %v1432, 7
    %v1482 = vrot.slane %v1433, 7
    %v1483 = vrot.slane %v1434, 7
    %v1484 = vrot.slane %v1435, 7
    %v1485 = vrot.slane %v1436, 7
    %v1486 = vrot.slane %v1437, 7
    %v1487 = vrot.slane %v1438, 7
    %v1488 = vrot.slane %v1439, 7
    %v1489 = vrot.slane %v1440, 7
    %v1490 = vrot.slane %v1441, 7
    %v1491 = vrot.slane %v1442, 7
    %v1492 = vrot.slane %v1443, 7
    %v1493 = vsel %vm761, %v1491, %v1492
    %v1494 = vsel %vm761, %v1490, %v1491
    %v1495 = vsel %vm761, %v1489, %v1490
    %v1496 = vsel %vm761, %v1488, %v1489
    %v1497 = vsel %vm761, %v1487, %v1488
    %v1498 = vsel %vm761, %v1486, %v1487
    %v1499 = vsel %vm761, %v1485, %v1486
    %v1500 = vsel %vm761, %v1484, %v1485
    %v1501 = vsel %vm761, %v1483, %v1484
    %v1502 = vsel %vm761, %v1482, %v1483
    %v1503 = vsel %vm761, %v1481, %v1482
    %v1504 = vsel %vm761, %v1480, %v1481
    %v1505 = vsel %vm761, %v1479, %v1480
    %v1506 = vsel %vm761, %v1478, %v1479
    %v1507 = vsel %vm761, %v1477, %v1478
    %v1508 = vsel %vm761, %v1476, %v1477
    %v1509 = vsel %vm761, %v1475, %v1476
    %v1510 = vsel %vm761, %v1474, %v1475
    %v1511 = vsel %vm761, %v1473, %v1474
    %v1512 = vsel %vm761, %v1472, %v1473
    %v1513 = vsel %vm761, %v1471, %v1472
    %v1514 = vsel %vm761, %v1470, %v1471
    %v1515 = vsel %vm761, %v1469, %v1470
    %v1516 = vsel %vm761, %v1468, %v1469
    %v1517 = vsel %vm761, %v1467, %v1468
    %v1518 = vsel %vm761, %v1466, %v1467
    %v1519 = vsel %vm761, %v1465, %v1466
    %v1520 = vsel %vm761, %v1464, %v1465
    %v1521 = vsel %vm761, %v1463, %v1464
    %v1522 = vsel %vm761, %v1462, %v1463
    %v1523 = vsel %vm761, %v1461, %v1462
    %v1524 = vsel %vm761, %v1492, %v1461
    %v1525 = vmul.f32 %v1524, %v584
    %v1526 = vmul.f32 %v1523, %v585
    %v1527 = vmul.f32 %v1522, %v586
    %v1528 = vmul.f32 %v1521, %v587
    %v1529 = vmul.f32 %v1520, %v588
    %v1530 = vmul.f32 %v1519, %v589
    %v1531 = vmul.f32 %v1518, %v590
    %v1532 = vmul.f32 %v1517, %v591
    %v1533 = vmul.f32 %v1516, %v592
    %v1534 = vmul.f32 %v1515, %v593
    %v1535 = vmul.f32 %v1514, %v594
    %v1536 = vmul.f32 %v1513, %v595
    %v1537 = vmul.f32 %v1512, %v596
    %v1538 = vmul.f32 %v1511, %v597
    %v1539 = vmul.f32 %v1510, %v598
    %v1540 = vmul.f32 %v1509, %v599
    %v1541 = vmul.f32 %v1508, %v600
    %v1542 = vmul.f32 %v1507, %v601
    %v1543 = vmul.f32 %v1506, %v602
    %v1544 = vmul.f32 %v1505, %v603
    %v1545 = vmul.f32 %v1504, %v604
    %v1546 = vmul.f32 %v1503, %v605
    %v1547 = vmul.f32 %v1502, %v606
    %v1548 = vmul.f32 %v1501, %v607
    %v1549 = vmul.f32 %v1500, %v608
    %v1550 = vmul.f32 %v1499, %v609
    %v1551 = vmul.f32 %v1498, %v610
    %v1552 = vmul.f32 %v1497, %v611
    %v1553 = vmul.f32 %v1496, %v612
    %v1554 = vmul.f32 %v1495, %v613
    %v1555 = vmul.f32 %v1494, %v614
    %v1556 = vmul.f32 %v1493, %v615
    %v1557 = vrot.slane %v1412, 1
    %v1558 = vrot.slane %v1413, 1
    %v1559 = vrot.slane %v1414, 1
    %v1560 = vrot.slane %v1415, 1
    %v1561 = vrot.slane %v1416, 1
    %v1562 = vrot.slane %v1417, 1
    %v1563 = vrot.slane %v1418, 1
    %v1564 = vrot.slane %v1419, 1
    %v1565 = vrot.slane %v1420, 1
    %v1566 = vrot.slane %v1421, 1
    %v1567 = vrot.slane %v1422, 1
    %v1568 = vrot.slane %v1423, 1
    %v1569 = vrot.slane %v1424, 1
    %v1570 = vrot.slane %v1425, 1
    %v1571 = vrot.slane %v1426, 1
    %v1572 = vrot.slane %v1427, 1
    %v1573 = vrot.slane %v1428, 1
    %v1574 = vrot.slane %v1429, 1
    %v1575 = vrot.slane %v1430, 1
    %v1576 = vrot.slane %v1431, 1
    %v1577 = vrot.slane %v1432, 1
    %v1578 = vrot.slane %v1433, 1
    %v1579 = vrot.slane %v1434, 1
    %v1580 = vrot.slane %v1435, 1
    %v1581 = vrot.slane %v1436, 1
    %v1582 = vrot.slane %v1437, 1
    %v1583 = vrot.slane %v1438, 1
    %v1584 = vrot.slane %v1439, 1
    %v1585 = vrot.slane %v1440, 1
    %v1586 = vrot.slane %v1441, 1
    %v1587 = vrot.slane %v1442, 1
    %v1588 = vrot.slane %v1443, 1
    %v1589 = vsel %vm858, %v1587, %v1588
    %v1590 = vsel %vm858, %v1586, %v1587
    %v1591 = vsel %vm858, %v1585, %v1586
    %v1592 = vsel %vm858, %v1584, %v1585
    %v1593 = vsel %vm858, %v1583, %v1584
    %v1594 = vsel %vm858, %v1582, %v1583
    %v1595 = vsel %vm858, %v1581, %v1582
    %v1596 = vsel %vm858, %v1580, %v1581
    %v1597 = vsel %vm858, %v1579, %v1580
    %v1598 = vsel %vm858, %v1578, %v1579
    %v1599 = vsel %vm858, %v1577, %v1578
    %v1600 = vsel %vm858, %v1576, %v1577
    %v1601 = vsel %vm858, %v1575, %v1576
    %v1602 = vsel %vm858, %v1574, %v1575
    %v1603 = vsel %vm858, %v1573, %v1574
    %v1604 = vsel %vm858, %v1572, %v1573
    %v1605 = vsel %vm858, %v1571, %v1572
    %v1606 = vsel %vm858, %v1570, %v1571
    %v1607 = vsel %vm858, %v1569, %v1570
    %v1608 = vsel %vm858, %v1568, %v1569
    %v1609 = vsel %vm858, %v1567, %v1568
    %v1610 = vsel %vm858, %v1566, %v1567
    %v1611 = vsel %vm858, %v1565, %v1566
    %v1612 = vsel %vm858, %v1564, %v1565
    %v1613 = vsel %vm858, %v1563, %v1564
    %v1614 = vsel %vm858, %v1562, %v1563
    %v1615 = vsel %vm858, %v1561, %v1562
    %v1616 = vsel %vm858, %v1560, %v1561
    %v1617 = vsel %vm858, %v1559, %v1560
    %v1618 = vsel %vm858, %v1558, %v1559
    %v1619 = vsel %vm858, %v1557, %v1558
    %v1620 = vsel %vm858, %v1588, %v1557
    %v1621 = vmul.f32 %v1619, %v680
    %v1622 = vmul.f32 %v1618, %v681
    %v1623 = vmul.f32 %v1617, %v682
    %v1624 = vmul.f32 %v1616, %v683
    %v1625 = vmul.f32 %v1615, %v684
    %v1626 = vmul.f32 %v1614, %v685
    %v1627 = vmul.f32 %v1613, %v686
    %v1628 = vmul.f32 %v1612, %v687
    %v1629 = vmul.f32 %v1611, %v688
    %v1630 = vmul.f32 %v1610, %v689
    %v1631 = vmul.f32 %v1609, %v690
    %v1632 = vmul.f32 %v1608, %v691
    %v1633 = vmul.f32 %v1607, %v692
    %v1634 = vmul.f32 %v1606, %v693
    %v1635 = vmul.f32 %v1605, %v694
    %v1636 = vmul.f32 %v1604, %v695
    %v1637 = vmul.f32 %v1603, %v696
    %v1638 = vmul.f32 %v1602, %v697
    %v1639 = vmul.f32 %v1601, %v698
    %v1640 = vmul.f32 %v1600, %v699
    %v1641 = vmul.f32 %v1599, %v700
    %v1642 = vmul.f32 %v1598, %v701
    %v1643 = vmul.f32 %v1597, %v702
    %v1644 = vmul.f32 %v1596, %v703
    %v1645 = vmul.f32 %v1595, %v704
    %v1646 = vmul.f32 %v1594, %v705
    %v1647 = vmul.f32 %v1593, %v706
    %v1648 = vmul.f32 %v1592, %v707
    %v1649 = vmul.f32 %v1591, %v708
    %v1650 = vmul.f32 %v1590, %v709
    %v1651 = vmul.f32 %v1589, %v710
    %v1652 = vmul.f32 %v1620, %v711
    %1653 = vrot.lane.b32.xlu0 %v1412, 32
    %v1654 = vpop.permute.xlu0 %1653
    %1655 = vrot.lane.b32.xlu0 %v1413, 32
    %v1656 = vpop.permute.xlu0 %1655
    %1657 = vrot.lane.b32.xlu0 %v1414, 32
    %v1658 = vpop.permute.xlu0 %1657
    %1659 = vrot.lane.b32.xlu0 %v1415, 32
    %v1660 = vpop.permute.xlu0 %1659
    %1661 = vrot.lane.b32.xlu0 %v1416, 32
    %v1662 = vpop.permute.xlu0 %1661
    %1663 = vrot.lane.b32.xlu0 %v1417, 32
    %v1664 = vpop.permute.xlu0 %1663
    %1665 = vrot.lane.b32.xlu0 %v1418, 32
    %v1666 = vpop.permute.xlu0 %1665
    %1667 = vrot.lane.b32.xlu0 %v1419, 32
    %v1668 = vpop.permute.xlu0 %1667
    %1669 = vrot.lane.b32.xlu0 %v1420, 32
    %v1670 = vpop.permute.xlu0 %1669
    %1671 = vrot.lane.b32.xlu0 %v1421, 32
    %v1672 = vpop.permute.xlu0 %1671
    %1673 = vrot.lane.b32.xlu0 %v1422, 32
    %v1674 = vpop.permute.xlu0 %1673
    %1675 = vrot.lane.b32.xlu0 %v1423, 32
    %v1676 = vpop.permute.xlu0 %1675
    %1677 = vrot.lane.b32.xlu0 %v1424, 32
    %v1678 = vpop.permute.xlu0 %1677
    %1679 = vrot.lane.b32.xlu0 %v1425, 32
    %v1680 = vpop.permute.xlu0 %1679
    %1681 = vrot.lane.b32.xlu0 %v1426, 32
    %v1682 = vpop.permute.xlu0 %1681
    %1683 = vrot.lane.b32.xlu0 %v1427, 32
    %v1684 = vpop.permute.xlu0 %1683
    %1685 = vrot.lane.b32.xlu0 %v1428, 32
    %v1686 = vpop.permute.xlu0 %1685
    %1687 = vrot.lane.b32.xlu0 %v1429, 32
    %v1688 = vpop.permute.xlu0 %1687
    %1689 = vrot.lane.b32.xlu0 %v1430, 32
    %v1690 = vpop.permute.xlu0 %1689
    %1691 = vrot.lane.b32.xlu0 %v1431, 32
    %v1692 = vpop.permute.xlu0 %1691
    %1693 = vrot.lane.b32.xlu0 %v1432, 32
    %v1694 = vpop.permute.xlu0 %1693
    %1695 = vrot.lane.b32.xlu0 %v1433, 32
    %v1696 = vpop.permute.xlu0 %1695
    %1697 = vrot.lane.b32.xlu0 %v1434, 32
    %v1698 = vpop.permute.xlu0 %1697
    %1699 = vrot.lane.b32.xlu0 %v1435, 32
    %v1700 = vpop.permute.xlu0 %1699
    %1701 = vrot.lane.b32.xlu0 %v1436, 32
    %v1702 = vpop.permute.xlu0 %1701
    %1703 = vrot.lane.b32.xlu0 %v1437, 32
    %v1704 = vpop.permute.xlu0 %1703
    %1705 = vrot.lane.b32.xlu0 %v1438, 32
    %v1706 = vpop.permute.xlu0 %1705
    %1707 = vrot.lane.b32.xlu0 %v1439, 32
    %v1708 = vpop.permute.xlu0 %1707
    %1709 = vrot.lane.b32.xlu0 %v1440, 32
    %v1710 = vpop.permute.xlu0 %1709
    %1711 = vrot.lane.b32.xlu0 %v1441, 32
    %v1712 = vpop.permute.xlu0 %1711
    %1713 = vrot.lane.b32.xlu0 %v1442, 32
    %v1714 = vpop.permute.xlu0 %1713
    %1715 = vrot.lane.b32.xlu0 %v1443, 32
    %v1716 = vpop.permute.xlu0 %1715
    %v1717 = vadd.f32 %v1525, %v1654
    %v1718 = vadd.f32 %v1526, %v1656
    %v1719 = vadd.f32 %v1527, %v1658
    %v1720 = vadd.f32 %v1528, %v1660
    %v1721 = vadd.f32 %v1529, %v1662
    %v1722 = vadd.f32 %v1530, %v1664
    %v1723 = vadd.f32 %v1531, %v1666
    %v1724 = vadd.f32 %v1532, %v1668
    %v1725 = vadd.f32 %v1533, %v1670
    %v1726 = vadd.f32 %v1534, %v1672
    %v1727 = vadd.f32 %v1535, %v1674
    %v1728 = vadd.f32 %v1536, %v1676
    %v1729 = vadd.f32 %v1537, %v1678
    %v1730 = vadd.f32 %v1538, %v1680
    %v1731 = vadd.f32 %v1539, %v1682
    %v1732 = vadd.f32 %v1540, %v1684
    %v1733 = vadd.f32 %v1541, %v1686
    %v1734 = vadd.f32 %v1542, %v1688
    %v1735 = vadd.f32 %v1543, %v1690
    %v1736 = vadd.f32 %v1544, %v1692
    %v1737 = vadd.f32 %v1545, %v1694
    %v1738 = vadd.f32 %v1546, %v1696
    %v1739 = vadd.f32 %v1547, %v1698
    %v1740 = vadd.f32 %v1548, %v1700
    %v1741 = vadd.f32 %v1549, %v1702
    %v1742 = vadd.f32 %v1550, %v1704
    %v1743 = vadd.f32 %v1551, %v1706
    %v1744 = vadd.f32 %v1552, %v1708
    %v1745 = vadd.f32 %v1553, %v1710
    %v1746 = vadd.f32 %v1554, %v1712
    %v1747 = vadd.f32 %v1555, %v1714
    %v1748 = vadd.f32 %v1556, %v1716
    %1749 = vrot.lane.b32.xlu0 %v1621, 64
    %v1750 = vpop.permute.xlu0 %1749
    %1751 = vrot.lane.b32.xlu0 %v1622, 64
    %v1752 = vpop.permute.xlu0 %1751
    %1753 = vrot.lane.b32.xlu0 %v1623, 64
    %v1754 = vpop.permute.xlu0 %1753
    %1755 = vrot.lane.b32.xlu0 %v1624, 64
    %v1756 = vpop.permute.xlu0 %1755
    %1757 = vrot.lane.b32.xlu0 %v1625, 64
    %v1758 = vpop.permute.xlu0 %1757
    %1759 = vrot.lane.b32.xlu0 %v1626, 64
    %v1760 = vpop.permute.xlu0 %1759
    %1761 = vrot.lane.b32.xlu0 %v1627, 64
    %v1762 = vpop.permute.xlu0 %1761
    %1763 = vrot.lane.b32.xlu0 %v1628, 64
    %v1764 = vpop.permute.xlu0 %1763
    %1765 = vrot.lane.b32.xlu0 %v1629, 64
    %v1766 = vpop.permute.xlu0 %1765
    %1767 = vrot.lane.b32.xlu0 %v1630, 64
    %v1768 = vpop.permute.xlu0 %1767
    %1769 = vrot.lane.b32.xlu0 %v1631, 64
    %v1770 = vpop.permute.xlu0 %1769
    %1771 = vrot.lane.b32.xlu0 %v1632, 64
    %v1772 = vpop.permute.xlu0 %1771
    %1773 = vrot.lane.b32.xlu0 %v1633, 64
    %v1774 = vpop.permute.xlu0 %1773
    %1775 = vrot.lane.b32.xlu0 %v1634, 64
    %v1776 = vpop.permute.xlu0 %1775
    %1777 = vrot.lane.b32.xlu0 %v1635, 64
    %v1778 = vpop.permute.xlu0 %1777
    %1779 = vrot.lane.b32.xlu0 %v1636, 64
    %v1780 = vpop.permute.xlu0 %1779
    %1781 = vrot.lane.b32.xlu0 %v1637, 64
    %v1782 = vpop.permute.xlu0 %1781
    %1783 = vrot.lane.b32.xlu0 %v1638, 64
    %v1784 = vpop.permute.xlu0 %1783
    %1785 = vrot.lane.b32.xlu0 %v1639, 64
    %v1786 = vpop.permute.xlu0 %1785
    %1787 = vrot.lane.b32.xlu0 %v1640, 64
    %v1788 = vpop.permute.xlu0 %1787
    %1789 = vrot.lane.b32.xlu0 %v1641, 64
    %v1790 = vpop.permute.xlu0 %1789
    %1791 = vrot.lane.b32.xlu0 %v1642, 64
    %v1792 = vpop.permute.xlu0 %1791
    %1793 = vrot.lane.b32.xlu0 %v1643, 64
    %v1794 = vpop.permute.xlu0 %1793
    %1795 = vrot.lane.b32.xlu0 %v1644, 64
    %v1796 = vpop.permute.xlu0 %1795
    %1797 = vrot.lane.b32.xlu0 %v1645, 64
    %v1798 = vpop.permute.xlu0 %1797
    %1799 = vrot.lane.b32.xlu0 %v1646, 64
    %v1800 = vpop.permute.xlu0 %1799
    %1801 = vrot.lane.b32.xlu0 %v1647, 64
    %v1802 = vpop.permute.xlu0 %1801
    %1803 = vrot.lane.b32.xlu0 %v1648, 64
    %v1804 = vpop.permute.xlu0 %1803
    %1805 = vrot.lane.b32.xlu0 %v1649, 64
    %v1806 = vpop.permute.xlu0 %1805
    %1807 = vrot.lane.b32.xlu0 %v1650, 64
    %v1808 = vpop.permute.xlu0 %1807
    %1809 = vrot.lane.b32.xlu0 %v1651, 64
    %v1810 = vpop.permute.xlu0 %1809
    %1811 = vrot.lane.b32.xlu0 %v1652, 64
    %v1812 = vpop.permute.xlu0 %1811
    %v1813 = vadd.f32 %v1717, %v1750
    %v1814 = vadd.f32 %v1718, %v1752
    %v1815 = vadd.f32 %v1719, %v1754
    %v1816 = vadd.f32 %v1720, %v1756
    %v1817 = vadd.f32 %v1721, %v1758
    %v1818 = vadd.f32 %v1722, %v1760
    %v1819 = vadd.f32 %v1723, %v1762
    %v1820 = vadd.f32 %v1724, %v1764
    %v1821 = vadd.f32 %v1725, %v1766
    %v1822 = vadd.f32 %v1726, %v1768
    %v1823 = vadd.f32 %v1727, %v1770
    %v1824 = vadd.f32 %v1728, %v1772
    %v1825 = vadd.f32 %v1729, %v1774
    %v1826 = vadd.f32 %v1730, %v1776
    %v1827 = vadd.f32 %v1731, %v1778
    %v1828 = vadd.f32 %v1732, %v1780
    %v1829 = vadd.f32 %v1733, %v1782
    %v1830 = vadd.f32 %v1734, %v1784
    %v1831 = vadd.f32 %v1735, %v1786
    %v1832 = vadd.f32 %v1736, %v1788
    %v1833 = vadd.f32 %v1737, %v1790
    %v1834 = vadd.f32 %v1738, %v1792
    %v1835 = vadd.f32 %v1739, %v1794
    %v1836 = vadd.f32 %v1740, %v1796
    %v1837 = vadd.f32 %v1741, %v1798
    %v1838 = vadd.f32 %v1742, %v1800
    %v1839 = vadd.f32 %v1743, %v1802
    %v1840 = vadd.f32 %v1744, %v1804
    %v1841 = vadd.f32 %v1745, %v1806
    %v1842 = vadd.f32 %v1746, %v1808
    %v1843 = vadd.f32 %v1747, %v1810
    %v1844 = vadd.f32 %v1748, %v1812
    %1845 = vmatprep.subr.mxu0 0.0
    %1846 = vmatpush1.msra.mxu0 %v1460
    %1847 = vmatprep.subr.mxu0 0.0
    %1848 = vmatpush1.msra.mxu0 %v1459
    %1849 = vmatprep.subr.mxu0 0.0
    %1850 = vmatpush1.msra.mxu0 %v1458
    %1851 = vmatprep.subr.mxu0 0.0
    %1852 = vmatpush1.msra.mxu0 %v1457
    %1853 = vmatprep.subr.mxu0 0.0
    %1854 = vmatpush1.msra.mxu0 %v1456
    %1855 = vmatprep.subr.mxu0 0.0
    %1856 = vmatpush1.msra.mxu0 %v1455
    %1857 = vmatprep.subr.mxu0 0.0
    %1858 = vmatpush1.msra.mxu0 %v1454
    %1859 = vmatprep.subr.mxu0 0.0
    %1860 = vmatpush1.msra.mxu0 %v1453
    %1861 = vmatprep.subr.mxu0 0.0
    %1862 = vmatpush1.msra.mxu0 %v1452
    %1863 = vmatprep.subr.mxu0 0.0
    %1864 = vmatpush1.msra.mxu0 %v1451
    %1865 = vmatprep.subr.mxu0 0.0
    %1866 = vmatpush1.msra.mxu0 %v1450
    %1867 = vmatprep.subr.mxu0 0.0
    %1868 = vmatpush1.msra.mxu0 %v1449
    %1869 = vmatprep.subr.mxu0 0.0
    %1870 = vmatpush1.msra.mxu0 %v1448
    %1871 = vmatprep.subr.mxu0 0.0
    %1872 = vmatpush1.msra.mxu0 %v1447
    %1873 = vmatprep.subr.mxu0 0.0
    %1874 = vmatpush1.msra.mxu0 %v1446
    %1875 = vmatprep.subr.mxu0 0.0
    %1876 = vmatpush1.msra.mxu0 %v1445
    %1877 = vmatprep.subr.mxu0 0.0
    %1878 = vmatpush2.msra.mxu0 0.0
    %1879 = vmatprep.subr.mxu0 0.0
    %1880 = vmatpush2.msra.mxu0 0.0
    %1881 = vmatprep.subr.mxu0 0.0
    %1882 = vmatpush2.msra.mxu0 0.0
    %1883 = vmatprep.subr.mxu0 0.0
    %1884 = vmatpush2.msra.mxu0 0.0
    %1885 = vmatprep.subr.mxu0 0.0
    %1886 = vmatpush2.msra.mxu0 0.0
    %1887 = vmatprep.subr.mxu0 0.0
    %1888 = vmatpush2.msra.mxu0 0.0
    %1889 = vmatprep.subr.mxu0 0.0
    %1890 = vmatpush2.msra.mxu0 0.0
    %1891 = vmatprep.subr.mxu0 0.0
    %1892 = vmatpush2.msra.mxu0 0.0
    %1893 = vmatprep.subr.mxu0 0.0
    %1894 = vmatpush2.msra.mxu0 0.0
    %1895 = vmatprep.subr.mxu0 0.0
    %1896 = vmatpush2.msra.mxu0 0.0
    %1897 = vmatprep.subr.mxu0 0.0
    %1898 = vmatpush2.msra.mxu0 0.0
    %1899 = vmatprep.subr.mxu0 0.0
    %1900 = vmatpush2.msra.mxu0 0.0
    %1901 = vmatprep.subr.mxu0 0.0
    %1902 = vmatpush2.msra.mxu0 0.0
    %1903 = vmatprep.subr.mxu0 0.0
    %1904 = vmatpush2.msra.mxu0 0.0
    %1905 = vmatprep.subr.mxu0 0.0
    %1906 = vmatpush2.msra.mxu0 0.0
    %1907 = vmatprep.subr.mxu0 0.0
    %1908 = vmatpush2.msra.mxu0 0.0
    %1909 = vmatprep.mubr.f32.mxu0 0.0
    %1910 = vmatmul.mubr.f32.gmra.mxu0 %v1813
    %v1911 = vpop.f32.mrf.mxu0
    %v1912 = vadd.f32 0.0, %v1911
    %v1913 = vpop.f32.mrf.mxu0
    %1914 = vmatprep.mubr.f32.mxu0 0.0
    %1915 = vmatmul.mubr.f32.gmra.mxu0 %v1814
    %v1916 = vpop.f32.mrf.mxu0
    %v1917 = vadd.f32 0.0, %v1916
    %v1918 = vpop.f32.mrf.mxu0
    %1919 = vmatprep.mubr.f32.mxu0 0.0
    %1920 = vmatmul.mubr.f32.gmra.mxu0 %v1815
    %v1921 = vpop.f32.mrf.mxu0
    %v1922 = vadd.f32 0.0, %v1921
    %v1923 = vpop.f32.mrf.mxu0
    %1924 = vmatprep.mubr.f32.mxu0 0.0
    %1925 = vmatmul.mubr.f32.gmra.mxu0 %v1816
    %v1926 = vpop.f32.mrf.mxu0
    %v1927 = vadd.f32 0.0, %v1926
    %v1928 = vpop.f32.mrf.mxu0
    %1929 = vmatprep.mubr.f32.mxu0 0.0
    %1930 = vmatmul.mubr.f32.gmra.mxu0 %v1817
    %v1931 = vpop.f32.mrf.mxu0
    %v1932 = vadd.f32 0.0, %v1931
    %v1933 = vpop.f32.mrf.mxu0
    %1934 = vmatprep.mubr.f32.mxu0 0.0
    %1935 = vmatmul.mubr.f32.gmra.mxu0 %v1818
    %v1936 = vpop.f32.mrf.mxu0
    %v1937 = vadd.f32 0.0, %v1936
    %v1938 = vpop.f32.mrf.mxu0
    %1939 = vmatprep.mubr.f32.mxu0 0.0
    %1940 = vmatmul.mubr.f32.gmra.mxu0 %v1819
    %v1941 = vpop.f32.mrf.mxu0
    %v1942 = vadd.f32 0.0, %v1941
    %v1943 = vpop.f32.mrf.mxu0
    %1944 = vmatprep.mubr.f32.mxu0 0.0
    %1945 = vmatmul.mubr.f32.gmra.mxu0 %v1820
    %v1946 = vpop.f32.mrf.mxu0
    %v1947 = vadd.f32 0.0, %v1946
    %v1948 = vpop.f32.mrf.mxu0
    %1949 = vmatprep.mubr.f32.mxu0 0.0
    %1950 = vmatmul.mubr.f32.gmra.mxu0 %v1821
    %v1951 = vpop.f32.mrf.mxu0
    %v1952 = vadd.f32 0.0, %v1951
    %v1953 = vpop.f32.mrf.mxu0
    %1954 = vmatprep.mubr.f32.mxu0 0.0
    %1955 = vmatmul.mubr.f32.gmra.mxu0 %v1822
    %v1956 = vpop.f32.mrf.mxu0
    %v1957 = vadd.f32 0.0, %v1956
    %v1958 = vpop.f32.mrf.mxu0
    %1959 = vmatprep.mubr.f32.mxu0 0.0
    %1960 = vmatmul.mubr.f32.gmra.mxu0 %v1823
    %v1961 = vpop.f32.mrf.mxu0
    %v1962 = vadd.f32 0.0, %v1961
    %v1963 = vpop.f32.mrf.mxu0
    %1964 = vmatprep.mubr.f32.mxu0 0.0
    %1965 = vmatmul.mubr.f32.gmra.mxu0 %v1824
    %v1966 = vpop.f32.mrf.mxu0
    %v1967 = vadd.f32 0.0, %v1966
    %v1968 = vpop.f32.mrf.mxu0
    %1969 = vmatprep.mubr.f32.mxu0 0.0
    %1970 = vmatmul.mubr.f32.gmra.mxu0 %v1825
    %v1971 = vpop.f32.mrf.mxu0
    %v1972 = vadd.f32 0.0, %v1971
    %v1973 = vpop.f32.mrf.mxu0
    %1974 = vmatprep.mubr.f32.mxu0 0.0
    %1975 = vmatmul.mubr.f32.gmra.mxu0 %v1826
    %v1976 = vpop.f32.mrf.mxu0
    %v1977 = vadd.f32 0.0, %v1976
    %v1978 = vpop.f32.mrf.mxu0
    %1979 = vmatprep.mubr.f32.mxu0 0.0
    %1980 = vmatmul.mubr.f32.gmra.mxu0 %v1827
    %v1981 = vpop.f32.mrf.mxu0
    %v1982 = vadd.f32 0.0, %v1981
    %v1983 = vpop.f32.mrf.mxu0
    %1984 = vmatprep.mubr.f32.mxu0 0.0
    %1985 = vmatmul.mubr.f32.gmra.mxu0 %v1828
    %v1986 = vpop.f32.mrf.mxu0
    %v1987 = vadd.f32 0.0, %v1986
    %v1988 = vpop.f32.mrf.mxu0
    %1989 = vmatprep.mubr.f32.mxu0 0.0
    %1990 = vmatmul.mubr.f32.gmra.mxu0 %v1829
    %v1991 = vpop.f32.mrf.mxu0
    %v1992 = vadd.f32 0.0, %v1991
    %v1993 = vpop.f32.mrf.mxu0
    %1994 = vmatprep.mubr.f32.mxu0 0.0
    %1995 = vmatmul.mubr.f32.gmra.mxu0 %v1830
    %v1996 = vpop.f32.mrf.mxu0
    %v1997 = vadd.f32 0.0, %v1996
    %v1998 = vpop.f32.mrf.mxu0
    %1999 = vmatprep.mubr.f32.mxu0 0.0
    %2000 = vmatmul.mubr.f32.gmra.mxu0 %v1831
    %v2001 = vpop.f32.mrf.mxu0
    %v2002 = vadd.f32 0.0, %v2001
    %v2003 = vpop.f32.mrf.mxu0
    %2004 = vmatprep.mubr.f32.mxu0 0.0
    %2005 = vmatmul.mubr.f32.gmra.mxu0 %v1832
    %v2006 = vpop.f32.mrf.mxu0
    %v2007 = vadd.f32 0.0, %v2006
    %v2008 = vpop.f32.mrf.mxu0
    %2009 = vmatprep.mubr.f32.mxu0 0.0
    %2010 = vmatmul.mubr.f32.gmra.mxu0 %v1833
    %v2011 = vpop.f32.mrf.mxu0
    %v2012 = vadd.f32 0.0, %v2011
    %v2013 = vpop.f32.mrf.mxu0
    %2014 = vmatprep.mubr.f32.mxu0 0.0
    %2015 = vmatmul.mubr.f32.gmra.mxu0 %v1834
    %v2016 = vpop.f32.mrf.mxu0
    %v2017 = vadd.f32 0.0, %v2016
    %v2018 = vpop.f32.mrf.mxu0
    %2019 = vmatprep.mubr.f32.mxu0 0.0
    %2020 = vmatmul.mubr.f32.gmra.mxu0 %v1835
    %v2021 = vpop.f32.mrf.mxu0
    %v2022 = vadd.f32 0.0, %v2021
    %v2023 = vpop.f32.mrf.mxu0
    %2024 = vmatprep.mubr.f32.mxu0 0.0
    %2025 = vmatmul.mubr.f32.gmra.mxu0 %v1836
    %v2026 = vpop.f32.mrf.mxu0
    %v2027 = vadd.f32 0.0, %v2026
    %v2028 = vpop.f32.mrf.mxu0
    %2029 = vmatprep.mubr.f32.mxu0 0.0
    %2030 = vmatmul.mubr.f32.gmra.mxu0 %v1837
    %v2031 = vpop.f32.mrf.mxu0
    %v2032 = vadd.f32 0.0, %v2031
    %v2033 = vpop.f32.mrf.mxu0
    %2034 = vmatprep.mubr.f32.mxu0 0.0
    %2035 = vmatmul.mubr.f32.gmra.mxu0 %v1838
    %v2036 = vpop.f32.mrf.mxu0
    %v2037 = vadd.f32 0.0, %v2036
    %v2038 = vpop.f32.mrf.mxu0
    %2039 = vmatprep.mubr.f32.mxu0 0.0
    %2040 = vmatmul.mubr.f32.gmra.mxu0 %v1839
    %v2041 = vpop.f32.mrf.mxu0
    %v2042 = vadd.f32 0.0, %v2041
    %v2043 = vpop.f32.mrf.mxu0
    %2044 = vmatprep.mubr.f32.mxu0 0.0
    %2045 = vmatmul.mubr.f32.gmra.mxu0 %v1840
    %v2046 = vpop.f32.mrf.mxu0
    %v2047 = vadd.f32 0.0, %v2046
    %v2048 = vpop.f32.mrf.mxu0
    %2049 = vmatprep.mubr.f32.mxu0 0.0
    %2050 = vmatmul.mubr.f32.gmra.mxu0 %v1841
    %v2051 = vpop.f32.mrf.mxu0
    %v2052 = vadd.f32 0.0, %v2051
    %v2053 = vpop.f32.mrf.mxu0
    %2054 = vmatprep.mubr.f32.mxu0 0.0
    %2055 = vmatmul.mubr.f32.gmra.mxu0 %v1842
    %v2056 = vpop.f32.mrf.mxu0
    %v2057 = vadd.f32 0.0, %v2056
    %v2058 = vpop.f32.mrf.mxu0
    %2059 = vmatprep.mubr.f32.mxu0 0.0
    %2060 = vmatmul.mubr.f32.gmra.mxu0 %v1843
    %v2061 = vpop.f32.mrf.mxu0
    %v2062 = vadd.f32 0.0, %v2061
    %v2063 = vpop.f32.mrf.mxu0
    %2064 = vmatprep.mubr.f32.mxu0 0.0
    %2065 = vmatmul.mubr.f32.gmra.mxu0 %v1844
    %v2066 = vpop.f32.mrf.mxu0
    %v2067 = vadd.f32 0.0, %v2066
    %v2068 = vpop.f32.mrf.mxu0
    %2069 = vdwg.mxu0
    %v2070 = vlaneseq
    %v2071 = vshrl.u32 %v2070, 7
    %v2072 = vsub.s32 2, %v2071
    %v2073 = vrot.slane %v712, %v2072
    %v2074 = vmul.f32 %v1912, %v2073
    %v2075 = vmul.f32 %v1917, %v2073
    %v2076 = vmul.f32 %v1922, %v2073
    %v2077 = vmul.f32 %v1927, %v2073
    %v2078 = vmul.f32 %v1932, %v2073
    %v2079 = vmul.f32 %v1937, %v2073
    %v2080 = vmul.f32 %v1942, %v2073
    %v2081 = vmul.f32 %v1947, %v2073
    %v2082 = vmul.f32 %v1952, %v2073
    %v2083 = vmul.f32 %v1957, %v2073
    %v2084 = vmul.f32 %v1962, %v2073
    %v2085 = vmul.f32 %v1967, %v2073
    %v2086 = vmul.f32 %v1972, %v2073
    %v2087 = vmul.f32 %v1977, %v2073
    %v2088 = vmul.f32 %v1982, %v2073
    %v2089 = vmul.f32 %v1987, %v2073
    %v2090 = vmul.f32 %v1992, %v2073
    %v2091 = vmul.f32 %v1997, %v2073
    %v2092 = vmul.f32 %v2002, %v2073
    %v2093 = vmul.f32 %v2007, %v2073
    %v2094 = vmul.f32 %v2012, %v2073
    %v2095 = vmul.f32 %v2017, %v2073
    %v2096 = vmul.f32 %v2022, %v2073
    %v2097 = vmul.f32 %v2027, %v2073
    %v2098 = vmul.f32 %v2032, %v2073
    %v2099 = vmul.f32 %v2037, %v2073
    %v2100 = vmul.f32 %v2042, %v2073
    %v2101 = vmul.f32 %v2047, %v2073
    %v2102 = vmul.f32 %v2052, %v2073
    %v2103 = vmul.f32 %v2057, %v2073
    %v2104 = vmul.f32 %v2062, %v2073
    %v2105 = vmul.f32 %v2067, %v2073
    %v2106 = vlaneseq
    %v2107 = vshrl.u32 %v2106, 7
    %v2108 = vsub.s32 3, %v2107
    %v2109 = vrot.slane %v712, %v2108
    %v2110 = vadd.f32 %v2074, %v2109
    %v2111 = vadd.f32 %v2075, %v2109
    %v2112 = vadd.f32 %v2076, %v2109
    %v2113 = vadd.f32 %v2077, %v2109
    %v2114 = vadd.f32 %v2078, %v2109
    %v2115 = vadd.f32 %v2079, %v2109
    %v2116 = vadd.f32 %v2080, %v2109
    %v2117 = vadd.f32 %v2081, %v2109
    %v2118 = vadd.f32 %v2082, %v2109
    %v2119 = vadd.f32 %v2083, %v2109
    %v2120 = vadd.f32 %v2084, %v2109
    %v2121 = vadd.f32 %v2085, %v2109
    %v2122 = vadd.f32 %v2086, %v2109
    %v2123 = vadd.f32 %v2087, %v2109
    %v2124 = vadd.f32 %v2088, %v2109
    %v2125 = vadd.f32 %v2089, %v2109
    %v2126 = vadd.f32 %v2090, %v2109
    %v2127 = vadd.f32 %v2091, %v2109
    %v2128 = vadd.f32 %v2092, %v2109
    %v2129 = vadd.f32 %v2093, %v2109
    %v2130 = vadd.f32 %v2094, %v2109
    %v2131 = vadd.f32 %v2095, %v2109
    %v2132 = vadd.f32 %v2096, %v2109
    %v2133 = vadd.f32 %v2097, %v2109
    %v2134 = vadd.f32 %v2098, %v2109
    %v2135 = vadd.f32 %v2099, %v2109
    %v2136 = vadd.f32 %v2100, %v2109
    %v2137 = vadd.f32 %v2101, %v2109
    %v2138 = vadd.f32 %v2102, %v2109
    %v2139 = vadd.f32 %v2103, %v2109
    %v2140 = vadd.f32 %v2104, %v2109
    %v2141 = vadd.f32 %v2105, %v2109
    %v2142 = vadd.f32 %v2110, %v2111
    %v2143 = vadd.f32 %v2142, %v2112
    %v2144 = vadd.f32 %v2143, %v2113
    %v2145 = vadd.f32 %v2144, %v2114
    %v2146 = vadd.f32 %v2145, %v2115
    %v2147 = vadd.f32 %v2146, %v2116
    %v2148 = vadd.f32 %v2147, %v2117
    %v2149 = vrot.slane %v2148, 4
    %v2150 = vadd.f32 %v2148, %v2149
    %v2151 = vrot.slane %v2150, 2
    %v2152 = vadd.f32 %v2150, %v2151
    %v2153 = vrot.slane %v2152, 1
    %v2154 = vadd.f32 %v2152, %v2153
    %v2155 = vadd.f32 %v2118, %v2119
    %v2156 = vadd.f32 %v2155, %v2120
    %v2157 = vadd.f32 %v2156, %v2121
    %v2158 = vadd.f32 %v2157, %v2122
    %v2159 = vadd.f32 %v2158, %v2123
    %v2160 = vadd.f32 %v2159, %v2124
    %v2161 = vadd.f32 %v2160, %v2125
    %v2162 = vrot.slane %v2161, 4
    %v2163 = vadd.f32 %v2161, %v2162
    %v2164 = vrot.slane %v2163, 2
    %v2165 = vadd.f32 %v2163, %v2164
    %v2166 = vrot.slane %v2165, 1
    %v2167 = vadd.f32 %v2165, %v2166
    %v2168 = vadd.f32 %v2126, %v2127
    %v2169 = vadd.f32 %v2168, %v2128
    %v2170 = vadd.f32 %v2169, %v2129
    %v2171 = vadd.f32 %v2170, %v2130
    %v2172 = vadd.f32 %v2171, %v2131
    %v2173 = vadd.f32 %v2172, %v2132
    %v2174 = vadd.f32 %v2173, %v2133
    %v2175 = vrot.slane %v2174, 4
    %v2176 = vadd.f32 %v2174, %v2175
    %v2177 = vrot.slane %v2176, 2
    %v2178 = vadd.f32 %v2176, %v2177
    %v2179 = vrot.slane %v2178, 1
    %v2180 = vadd.f32 %v2178, %v2179
    %v2181 = vadd.f32 %v2134, %v2135
    %v2182 = vadd.f32 %v2181, %v2136
    %v2183 = vadd.f32 %v2182, %v2137
    %v2184 = vadd.f32 %v2183, %v2138
    %v2185 = vadd.f32 %v2184, %v2139
    %v2186 = vadd.f32 %v2185, %v2140
    %v2187 = vadd.f32 %v2186, %v2141
    %v2188 = vrot.slane %v2187, 4
    %v2189 = vadd.f32 %v2187, %v2188
    %v2190 = vrot.slane %v2189, 2
    %v2191 = vadd.f32 %v2189, %v2190
    %v2192 = vrot.slane %v2191, 1
    %v2193 = vadd.f32 %v2191, %v2192
    %v2194 = vmul.f32 %v2154, 0.015625
    %v2195 = vmul.f32 %v2167, 0.015625
    %v2196 = vmul.f32 %v2180, 0.015625
    %v2197 = vmul.f32 %v2193, 0.015625
    %v2198 = vld [vmem:[#allocation7] sm:$0xff]
    %v2199 = vld [vmem:[#allocation7 + $0x8] sm:$0xff]
    %v2200 = vld [vmem:[#allocation7 + $0x10] sm:$0xff]
    %v2201 = vld [vmem:[#allocation7 + $0x18] sm:$0xff]
    %v2202 = vld [vmem:[#allocation7 + $0x20] sm:$0xff]
    %v2203 = vld [vmem:[#allocation7 + $0x28] sm:$0xff]
    %v2204 = vld [vmem:[#allocation7 + $0x30] sm:$0xff]
    %v2205 = vld [vmem:[#allocation7 + $0x38] sm:$0xff]
    %v2206 = vld [vmem:[#allocation7 + $0x40] sm:$0xff]
    %v2207 = vld [vmem:[#allocation7 + $0x48] sm:$0xff]
    %v2208 = vld [vmem:[#allocation7 + $0x50] sm:$0xff]
    %v2209 = vld [vmem:[#allocation7 + $0x58] sm:$0xff]
    %v2210 = vld [vmem:[#allocation7 + $0x60] sm:$0xff]
    %v2211 = vld [vmem:[#allocation7 + $0x68] sm:$0xff]
    %v2212 = vld [vmem:[#allocation7 + $0x70] sm:$0xff]
    %v2213 = vld [vmem:[#allocation7 + $0x78] sm:$0xff]
    %v2214 = vlaneseq
    %v2215 = vshrl.u32 %v2214, 7
    %v2216 = vsub.s32 4, %v2215
    %v2217 = vrot.slane %v712, %v2216
    %vm2222 = vcmask 1041409
    %v2223 = vsel %vm2222, %v2195, %v2194
    %vm2224 = vcmask 1042434
    %v2225 = vsel %vm2224, %v2196, %v2223
    %vm2226 = vcmask 1043459
    %v2227 = vsel %vm2226, %v2197, %v2225
    %2229 = vmatprep.subr.mxu0 0.0
    %2230 = vmatpush1.msra.mxu0 %v2213
    %2231 = vmatprep.subr.mxu0 0.0
    %2232 = vmatpush1.msra.mxu0 %v2212
    %2233 = vmatprep.subr.mxu0 0.0
    %2234 = vmatpush1.msra.mxu0 %v2211
    %2235 = vmatprep.subr.mxu0 0.0
    %2236 = vmatpush1.msra.mxu0 %v2210
    %2237 = vmatprep.subr.mxu0 0.0
    %2238 = vmatpush1.msra.mxu0 %v2209
    %2239 = vmatprep.subr.mxu0 0.0
    %2240 = vmatpush1.msra.mxu0 %v2208
    %2241 = vmatprep.subr.mxu0 0.0
    %2242 = vmatpush1.msra.mxu0 %v2207
    %2243 = vmatprep.subr.mxu0 0.0
    %2244 = vmatpush1.msra.mxu0 %v2206
    %2245 = vmatprep.subr.mxu0 0.0
    %2246 = vmatpush1.msra.mxu0 %v2205
    %2247 = vmatprep.subr.mxu0 0.0
    %2248 = vmatpush1.msra.mxu0 %v2204
    %2249 = vmatprep.subr.mxu0 0.0
    %2250 = vmatpush1.msra.mxu0 %v2203
    %2251 = vmatprep.subr.mxu0 0.0
    %2252 = vmatpush1.msra.mxu0 %v2202
    %2253 = vmatprep.subr.mxu0 0.0
    %2254 = vmatpush1.msra.mxu0 %v2201
    %2255 = vmatprep.subr.mxu0 0.0
    %2256 = vmatpush1.msra.mxu0 %v2200
    %2257 = vmatprep.subr.mxu0 0.0
    %2258 = vmatpush1.msra.mxu0 %v2199
    %2259 = vmatprep.subr.mxu0 0.0
    %2260 = vmatpush1.msra.mxu0 %v2198
    %2261 = vmatprep.subr.mxu0 0.0
    %2262 = vmatpush2.msra.mxu0 0.0
    %2263 = vmatprep.subr.mxu0 0.0
    %2264 = vmatpush2.msra.mxu0 0.0
    %2265 = vmatprep.subr.mxu0 0.0
    %2266 = vmatpush2.msra.mxu0 0.0
    %2267 = vmatprep.subr.mxu0 0.0
    %2268 = vmatpush2.msra.mxu0 0.0
    %2269 = vmatprep.subr.mxu0 0.0
    %2270 = vmatpush2.msra.mxu0 0.0
    %2271 = vmatprep.subr.mxu0 0.0
    %2272 = vmatpush2.msra.mxu0 0.0
    %2273 = vmatprep.subr.mxu0 0.0
    %2274 = vmatpush2.msra.mxu0 0.0
    %2275 = vmatprep.subr.mxu0 0.0
    %2276 = vmatpush2.msra.mxu0 0.0
    %2277 = vmatprep.subr.mxu0 0.0
    %2278 = vmatpush2.msra.mxu0 0.0
    %2279 = vmatprep.subr.mxu0 0.0
    %2280 = vmatpush2.msra.mxu0 0.0
    %2281 = vmatprep.subr.mxu0 0.0
    %2282 = vmatpush2.msra.mxu0 0.0
    %2283 = vmatprep.subr.mxu0 0.0
    %2284 = vmatpush2.msra.mxu0 0.0
    %2285 = vmatprep.subr.mxu0 0.0
    %2286 = vmatpush2.msra.mxu0 0.0
    %2287 = vmatprep.subr.mxu0 0.0
    %2288 = vmatpush2.msra.mxu0 0.0
    %2289 = vmatprep.subr.mxu0 0.0
    %2290 = vmatpush2.msra.mxu0 0.0
    %2291 = vmatprep.subr.mxu0 0.0
    %2292 = vmatpush2.msra.mxu0 0.0
    %2293 = vmatprep.mubr.f32.mxu0 0.0
    %2294 = vmatmul.mubr.f32.gmra.mxu0 %v2227
    %v2295 = vpop.f32.mrf.mxu0
    %v2296 = vadd.f32 %v2217, %v2295
    %v2297 = vpop.f32.mrf.mxu0
    %2298 = vdwg.mxu0
    %v2299 = vmax.f32 %v2296, 0.0
    %s2300 = scalar_lea.vmem [#allocation7], 128
    %v2301 = vld [vmem:[%s2300] sm:$0xff]
    %v2302 = vld [vmem:[%s2300 + $0x8] sm:$0xff]
    %v2303 = vld [vmem:[%s2300 + $0x10] sm:$0xff]
    %v2304 = vld [vmem:[%s2300 + $0x18] sm:$0xff]
    %v2305 = vld [vmem:[%s2300 + $0x20] sm:$0xff]
    %v2306 = vld [vmem:[%s2300 + $0x28] sm:$0xff]
    %v2307 = vld [vmem:[%s2300 + $0x30] sm:$0xff]
    %v2308 = vld [vmem:[%s2300 + $0x38] sm:$0xff]
    %v2309 = vld [vmem:[%s2300 + $0x40] sm:$0xff]
    %v2310 = vld [vmem:[%s2300 + $0x48] sm:$0xff]
    %v2311 = vld [vmem:[%s2300 + $0x50] sm:$0xff]
    %v2312 = vld [vmem:[%s2300 + $0x58] sm:$0xff]
    %v2313 = vld [vmem:[%s2300 + $0x60] sm:$0xff]
    %v2314 = vld [vmem:[%s2300 + $0x68] sm:$0xff]
    %v2315 = vld [vmem:[%s2300 + $0x70] sm:$0xff]
    %v2316 = vld [vmem:[%s2300 + $0x78] sm:$0xff]
    %v2317 = vlaneseq
    %v2318 = vshrl.u32 %v2317, 7
    %v2319 = vsub.s32 5, %v2318
    %v2320 = vrot.slane %v712, %v2319
    %2321 = vmatprep.subr.mxu0 0.0
    %2322 = vmatpush1.msra.mxu0 %v2316
    %2323 = vmatprep.subr.mxu0 0.0
    %2324 = vmatpush1.msra.mxu0 %v2315
    %2325 = vmatprep.subr.mxu0 0.0
    %2326 = vmatpush1.msra.mxu0 %v2314
    %2327 = vmatprep.subr.mxu0 0.0
    %2328 = vmatpush1.msra.mxu0 %v2313
    %2329 = vmatprep.subr.mxu0 0.0
    %2330 = vmatpush1.msra.mxu0 %v2312
    %2331 = vmatprep.subr.mxu0 0.0
    %2332 = vmatpush1.msra.mxu0 %v2311
    %2333 = vmatprep.subr.mxu0 0.0
    %2334 = vmatpush1.msra.mxu0 %v2310
    %2335 = vmatprep.subr.mxu0 0.0
    %2336 = vmatpush1.msra.mxu0 %v2309
    %2337 = vmatprep.subr.mxu0 0.0
    %2338 = vmatpush1.msra.mxu0 %v2308
    %2339 = vmatprep.subr.mxu0 0.0
    %2340 = vmatpush1.msra.mxu0 %v2307
    %2341 = vmatprep.subr.mxu0 0.0
    %2342 = vmatpush1.msra.mxu0 %v2306
    %2343 = vmatprep.subr.mxu0 0.0
    %2344 = vmatpush1.msra.mxu0 %v2305
    %2345 = vmatprep.subr.mxu0 0.0
    %2346 = vmatpush1.msra.mxu0 %v2304
    %2347 = vmatprep.subr.mxu0 0.0
    %2348 = vmatpush1.msra.mxu0 %v2303
    %2349 = vmatprep.subr.mxu0 0.0
    %2350 = vmatpush1.msra.mxu0 %v2302
    %2351 = vmatprep.subr.mxu0 0.0
    %2352 = vmatpush1.msra.mxu0 %v2301
    %2353 = vmatprep.subr.mxu0 0.0
    %2354 = vmatpush2.msra.mxu0 0.0
    %2355 = vmatprep.subr.mxu0 0.0
    %2356 = vmatpush2.msra.mxu0 0.0
    %2357 = vmatprep.subr.mxu0 0.0
    %2358 = vmatpush2.msra.mxu0 0.0
    %2359 = vmatprep.subr.mxu0 0.0
    %2360 = vmatpush2.msra.mxu0 0.0
    %2361 = vmatprep.subr.mxu0 0.0
    %2362 = vmatpush2.msra.mxu0 0.0
    %2363 = vmatprep.subr.mxu0 0.0
    %2364 = vmatpush2.msra.mxu0 0.0
    %2365 = vmatprep.subr.mxu0 0.0
    %2366 = vmatpush2.msra.mxu0 0.0
    %2367 = vmatprep.subr.mxu0 0.0
    %2368 = vmatpush2.msra.mxu0 0.0
    %2369 = vmatprep.subr.mxu0 0.0
    %2370 = vmatpush2.msra.mxu0 0.0
    %2371 = vmatprep.subr.mxu0 0.0
    %2372 = vmatpush2.msra.mxu0 0.0
    %2373 = vmatprep.subr.mxu0 0.0
    %2374 = vmatpush2.msra.mxu0 0.0
    %2375 = vmatprep.subr.mxu0 0.0
    %2376 = vmatpush2.msra.mxu0 0.0
    %2377 = vmatprep.subr.mxu0 0.0
    %2378 = vmatpush2.msra.mxu0 0.0
    %2379 = vmatprep.subr.mxu0 0.0
    %2380 = vmatpush2.msra.mxu0 0.0
    %2381 = vmatprep.subr.mxu0 0.0
    %2382 = vmatpush2.msra.mxu0 0.0
    %2383 = vmatprep.subr.mxu0 0.0
    %2384 = vmatpush2.msra.mxu0 0.0
    %2385 = vmatprep.mubr.f32.mxu0 0.0
    %2386 = vmatmul.mubr.f32.gmra.mxu0 %v2299
    %v2387 = vpop.f32.mrf.mxu0
    %v2388 = vadd.f32 %v2320, %v2387
    %v2389 = vpop.f32.mrf.mxu0
    %2390 = vdwg.mxu0
    %v2391 = vsub.f32 0.0, %v2388
    %v2392 = vmul.f32 %v2391, 1.442695
    %v2393 = vpow.pop %v2392
    %v2394 = vadd.f32 %v2393, 1.0
    %v2395 = vrcp.pop %v2394
    %v2398 = vunpack.c.l.s4 1966171168
    %v2399 = vunpack.c.0.s8 %v2398
    %v2400 = vlaneseq
    %v2401 = vshrl.u32 %v2400, 7
    %v2402 = vsub.s32 %v2399, %v2401
    %v2403 = vrot.slane %v2395, %v2402
    %v2404 = vcombine.high %v2403, %v2403
    %v2406 = vunpack.c.l.s4 1966171168
    %v2407 = vunpack.c.0.s8 %v2406
    %v2408 = vlaneseq
    %v2409 = vshrl.u32 %v2408, 7
    %v2410 = vsub.s32 %v2407, %v2409
    %v2411 = vrot.slane %v2403, %v2410
    %v2413 = vunpack.c.l.s4 1966171168
    %v2414 = vunpack.c.0.s8 %v2413
    %v2415 = vlaneseq
    %v2416 = vshrl.u32 %v2415, 7
    %v2417 = vsub.s32 %v2414, %v2416
    %v2418 = vrot.slane %v2404, %v2417
    %v2419 = vcombine.high %v2411, %v2411
    %v2420 = vcombine.high %v2418, %v2418
    %v2421 = vlaneseq
    %v2422 = vshrl.u32 %v2421, 7
    %v2423 = vsub.s32 0, %v2422
    %v2424 = vrot.slane %v2411, %v2423
    %v2425 = vlaneseq
    %v2426 = vshrl.u32 %v2425, 7
    %v2427 = vsub.s32 0, %v2426
    %v2428 = vrot.slane %v2418, %v2427
    %v2429 = vlaneseq
    %v2430 = vshrl.u32 %v2429, 7
    %v2431 = vsub.s32 0, %v2430
    %v2432 = vrot.slane %v2419, %v2431
    %v2433 = vlaneseq
    %v2434 = vshrl.u32 %v2433, 7
    %v2435 = vsub.s32 0, %v2434
    %v2436 = vrot.slane %v2420, %v2435
    %v2441 = vmul.f32 %v2110, %v2424
    %v2442 = vmul.f32 %v2111, %v2424
    %v2443 = vmul.f32 %v2112, %v2424
    %v2444 = vmul.f32 %v2113, %v2424
    %v2445 = vmul.f32 %v2114, %v2424
    %v2446 = vmul.f32 %v2115, %v2424
    %v2447 = vmul.f32 %v2116, %v2424
    %v2448 = vmul.f32 %v2117, %v2424
    %v2449 = vmul.f32 %v2118, %v2428
    %v2450 = vmul.f32 %v2119, %v2428
    %v2451 = vmul.f32 %v2120, %v2428
    %v2452 = vmul.f32 %v2121, %v2428
    %v2453 = vmul.f32 %v2122, %v2428
    %v2454 = vmul.f32 %v2123, %v2428
    %v2455 = vmul.f32 %v2124, %v2428
    %v2456 = vmul.f32 %v2125, %v2428
    %v2457 = vmul.f32 %v2126, %v2432
    %v2458 = vmul.f32 %v2127, %v2432
    %v2459 = vmul.f32 %v2128, %v2432
    %v2460 = vmul.f32 %v2129, %v2432
    %v2461 = vmul.f32 %v2130, %v2432
    %v2462 = vmul.f32 %v2131, %v2432
    %v2463 = vmul.f32 %v2132, %v2432
    %v2464 = vmul.f32 %v2133, %v2432
    %v2465 = vmul.f32 %v2134, %v2436
    %v2466 = vmul.f32 %v2135, %v2436
    %v2467 = vmul.f32 %v2136, %v2436
    %v2468 = vmul.f32 %v2137, %v2436
    %v2469 = vmul.f32 %v2138, %v2436
    %v2470 = vmul.f32 %v2139, %v2436
    %v2471 = vmul.f32 %v2140, %v2436
    %v2472 = vmul.f32 %v2141, %v2436
    %v2473 = vadd.f32 %v2441, %v71
    %v2474 = vadd.f32 %v2442, %v72
    %v2475 = vadd.f32 %v2443, %v73
    %v2476 = vadd.f32 %v2444, %v74
    %v2477 = vadd.f32 %v2445, %v75
    %v2478 = vadd.f32 %v2446, %v76
    %v2479 = vadd.f32 %v2447, %v77
    %v2480 = vadd.f32 %v2448, %v78
    %v2481 = vadd.f32 %v2449, %v79
    %v2482 = vadd.f32 %v2450, %v80
    %v2483 = vadd.f32 %v2451, %v81
    %v2484 = vadd.f32 %v2452, %v82
    %v2485 = vadd.f32 %v2453, %v83
    %v2486 = vadd.f32 %v2454, %v84
    %v2487 = vadd.f32 %v2455, %v85
    %v2488 = vadd.f32 %v2456, %v86
    %v2489 = vadd.f32 %v2457, %v87
    %v2490 = vadd.f32 %v2458, %v88
    %v2491 = vadd.f32 %v2459, %v89
    %v2492 = vadd.f32 %v2460, %v90
    %v2493 = vadd.f32 %v2461, %v91
    %v2494 = vadd.f32 %v2462, %v92
    %v2495 = vadd.f32 %v2463, %v93
    %v2496 = vadd.f32 %v2464, %v94
    %v2497 = vadd.f32 %v2465, %v95
    %v2498 = vadd.f32 %v2466, %v96
    %v2499 = vadd.f32 %v2467, %v97
    %v2500 = vadd.f32 %v2468, %v98
    %v2501 = vadd.f32 %v2469, %v99
    %v2502 = vadd.f32 %v2470, %v100
    %v2503 = vadd.f32 %v2471, %v101
    %v2504 = vadd.f32 %v2472, %v102
    %v2505 = vmax.f32 %v2473, 0.0
    %v2506 = vmax.f32 %v2474, 0.0
    %v2507 = vmax.f32 %v2475, 0.0
    %v2508 = vmax.f32 %v2476, 0.0
    %v2509 = vmax.f32 %v2477, 0.0
    %v2510 = vmax.f32 %v2478, 0.0
    %v2511 = vmax.f32 %v2479, 0.0
    %v2512 = vmax.f32 %v2480, 0.0
    %v2513 = vmax.f32 %v2481, 0.0
    %v2514 = vmax.f32 %v2482, 0.0
    %v2515 = vmax.f32 %v2483, 0.0
    %v2516 = vmax.f32 %v2484, 0.0
    %v2517 = vmax.f32 %v2485, 0.0
    %v2518 = vmax.f32 %v2486, 0.0
    %v2519 = vmax.f32 %v2487, 0.0
    %v2520 = vmax.f32 %v2488, 0.0
    %v2521 = vmax.f32 %v2489, 0.0
    %v2522 = vmax.f32 %v2490, 0.0
    %v2523 = vmax.f32 %v2491, 0.0
    %v2524 = vmax.f32 %v2492, 0.0
    %v2525 = vmax.f32 %v2493, 0.0
    %v2526 = vmax.f32 %v2494, 0.0
    %v2527 = vmax.f32 %v2495, 0.0
    %v2528 = vmax.f32 %v2496, 0.0
    %v2529 = vmax.f32 %v2497, 0.0
    %v2530 = vmax.f32 %v2498, 0.0
    %v2531 = vmax.f32 %v2499, 0.0
    %v2532 = vmax.f32 %v2500, 0.0
    %v2533 = vmax.f32 %v2501, 0.0
    %v2534 = vmax.f32 %v2502, 0.0
    %v2535 = vmax.f32 %v2503, 0.0
    %v2536 = vmax.f32 %v2504, 0.0
    %2537 = vst [vmem:[#allocation10] sm:$0xff] %v2505
    %2538 = vst [vmem:[#allocation10 + $0x8] sm:$0xff] %v2506
    %2539 = vst [vmem:[#allocation10 + $0x10] sm:$0xff] %v2507
    %2540 = vst [vmem:[#allocation10 + $0x18] sm:$0xff] %v2508
    %2541 = vst [vmem:[#allocation10 + $0x20] sm:$0xff] %v2509
    %2542 = vst [vmem:[#allocation10 + $0x28] sm:$0xff] %v2510
    %2543 = vst [vmem:[#allocation10 + $0x30] sm:$0xff] %v2511
    %2544 = vst [vmem:[#allocation10 + $0x38] sm:$0xff] %v2512
    %2545 = vst [vmem:[#allocation10 + $0x40] sm:$0xff] %v2513
    %2546 = vst [vmem:[#allocation10 + $0x48] sm:$0xff] %v2514
    %2547 = vst [vmem:[#allocation10 + $0x50] sm:$0xff] %v2515
    %2548 = vst [vmem:[#allocation10 + $0x58] sm:$0xff] %v2516
    %2549 = vst [vmem:[#allocation10 + $0x60] sm:$0xff] %v2517
    %2550 = vst [vmem:[#allocation10 + $0x68] sm:$0xff] %v2518
    %2551 = vst [vmem:[#allocation10 + $0x70] sm:$0xff] %v2519
    %2552 = vst [vmem:[#allocation10 + $0x78] sm:$0xff] %v2520
    %2553 = vst [vmem:[#allocation10 + $0x80] sm:$0xff] %v2521
    %2554 = vst [vmem:[#allocation10 + $0x88] sm:$0xff] %v2522
    %2555 = vst [vmem:[#allocation10 + $0x90] sm:$0xff] %v2523
    %2556 = vst [vmem:[#allocation10 + $0x98] sm:$0xff] %v2524
    %2557 = vst [vmem:[#allocation10 + $0xa0] sm:$0xff] %v2525
    %2558 = vst [vmem:[#allocation10 + $0xa8] sm:$0xff] %v2526
    %2559 = vst [vmem:[#allocation10 + $0xb0] sm:$0xff] %v2527
    %2560 = vst [vmem:[#allocation10 + $0xb8] sm:$0xff] %v2528
    %2561 = vst [vmem:[#allocation10 + $0xc0] sm:$0xff] %v2529
    %2562 = vst [vmem:[#allocation10 + $0xc8] sm:$0xff] %v2530
    %2563 = vst [vmem:[#allocation10 + $0xd0] sm:$0xff] %v2531
    %2564 = vst [vmem:[#allocation10 + $0xd8] sm:$0xff] %v2532
    %2565 = vst [vmem:[#allocation10 + $0xe0] sm:$0xff] %v2533
    %2566 = vst [vmem:[#allocation10 + $0xe8] sm:$0xff] %v2534
    %2567 = vst [vmem:[#allocation10 + $0xf0] sm:$0xff] %v2535
    %2568 = vst [vmem:[#allocation10 + $0xf8] sm:$0xff] %v2536
    // Predicated region
    $region34: #{tpu_custom_call.1} parent=1 // pred_check
      _
    $region35: #{tpu_custom_call.1} parent=1 // pred_check_branch
      %2570 = sbr.rel (0) target = $region37
    $region36: #{tpu_custom_call.1} parent=1 // pred_region
      %s2572 = ssub.s32 4096, 4096
      %2573 = vsyncadd [#allocation4], %s2572
      %s2574 = sshll.u32 [#allocation10], 4
      %s2575 = int_to_ptr.vmem [resolvable:$true] %s2574
      %2580 = dma.vmem_to_hbm [thread:$0]  %s2575, 4096, %s4, [#allocation4], 128, 128, 8
    $region37: #{tpu_custom_call.1} parent=1 // pred_fallthru
      _
    // Predicated region
    $region38: #{tpu_custom_call.1} parent=1 // pred_check
      _
    $region39: #{tpu_custom_call.1} parent=1 // pred_check_branch
      %2582 = sbr.rel (0) target = $region41
    $region40: #{tpu_custom_call.1} parent=1 // pred_region
      %2583 = dma.done [#allocation4], 4096
    $region41: #{tpu_custom_call.1} parent=1 // pred_fallthru
      _
    %2584 = vsyncpa [#allocation3], 1
    %2585 = vsyncpa [#allocation6], 1
    %2586 = vsyncpa [#allocation9], 1
    %2587 = vsyncpa [#allocation4], 1

</llo_original>
